<compile_context>
chip_gen: v6e
topology: v6e:2x2x1
jax: 0.10.0
libtpu: 0.0.40
codegen_flags: <defaults>
</compile_context>

<pallas_src>
import functools

import jax
import jax.numpy as jnp
from jax.experimental import pallas as pl
from jax.experimental.pallas import tpu as pltpu

CHANNEL = 4          # o.channel
CC = 4               # o.cc (defaults to 4 in the module)
LANES = 128
MAX_ROW_TILE = 1024  # 1024 x 128 f32 = 512 KiB per block
CHUNK_ROWS = 32      # rows per vreg-resident sub-chunk (4 f32 vregs per value)

_PARAM_NAMES = ('w1', 'b1', 'w2', 'b2', 'w3', 'b3', 'w4', 'b4', 'w5', 'b5')


def _elu(v):
    # ELU(alpha=1) forward: x if x > 0 else exp(x) - 1.
    # (inf in the dead branch is discarded by the select; forward-only.)
    return jnp.where(v > 0, v, jnp.exp(v) - 1.0)


def pack_params(params):
    """Flatten the 10 per-channel weight/bias tensors into one f32 vector."""
    offs = {}
    flats = []
    off = 0
    for name, p in zip(_PARAM_NAMES, params):
        offs[name] = off
        f = jnp.asarray(p, jnp.float32).reshape(-1)
        flats.append(f)
        off += f.shape[0]
    return jnp.concatenate(flats), offs


def _load_channel_params(pr, c, cc, offs):
    """Read ALL of channel c's weights once (SMEM scalar loads), hoisted out
    of the per-chunk loop.  pr: 1-D SMEM ref; c: channel index (scalar)."""
    w1 = [pr[offs['w1'] + c * cc + j] for j in range(cc)]
    b1 = [pr[offs['b1'] + c * cc + j] for j in range(cc)]
    wmid, bmid = [], []
    for wn, bn in (('w2', 'b2'), ('w3', 'b3'), ('w4', 'b4')):
        wbase = offs[wn] + c * cc * cc
        bbase = offs[bn] + c * cc
        wmid.append([[pr[wbase + i * cc + j] for j in range(cc)]
                     for i in range(cc)])
        bmid.append([pr[bbase + i] for i in range(cc)])
    w5 = [pr[offs['w5'] + c * cc + j] for j in range(cc)]
    b5 = pr[offs['b5'] + c]
    return w1, b1, wmid, bmid, w5, b5


def _mlp_chunk(wb, x, cc):
    """Per-channel scalar MLP 1->cc->cc->cc->cc->1 on one (chunk, 128) f32
    tile.  All intermediates are vreg-resident; weights are scalar broadcasts
    on the VPU (no MXU — K=4 would give <4% MXU utilization)."""
    w1, b1, wmid, bmid, w5, b5 = wb
    # layer 1: 1 -> cc
    h = [_elu(w1[j] * x + b1[j]) for j in range(cc)]
    # layers 2..4: cc -> cc
    for wl, bl in zip(wmid, bmid):
        h_new = []
        for i in range(cc):
            z = wl[i][0] * h[0]
            for j in range(1, cc):
                z = z + wl[i][j] * h[j]
            h_new.append(_elu(z + bl[i]))
        h = h_new
    # layer 5: cc -> 1
    out = w5[0] * h[0]
    for j in range(1, cc):
        out = out + w5[j] * h[j]
    return out + b5


def _rbf_kernel(params_ref, x_ref, o_ref, *, cc, offs, chunk):
    c = pl.program_id(0)                       # grid = (C, tiles)
    wb = _load_channel_params(params_ref, c, cc, offs)
    n_chunks = x_ref.shape[0] // chunk

    @pl.loop(0, n_chunks)
    def _(i):
        r = pl.multiple_of(i * chunk, chunk)
        x = x_ref[pl.ds(r, chunk), :].astype(jnp.float32)
        o_ref[pl.ds(r, chunk), :] = _mlp_chunk(wb, x, cc).astype(o_ref.dtype)


def _rbf_combine_kernel(params_ref, x_ref, y_ref, o_ref, *, cc, offs, chunk,
                        operator):
    c = pl.program_id(0)
    wb = _load_channel_params(params_ref, c, cc, offs)
    n_chunks = x_ref.shape[0] // chunk

    @pl.loop(0, n_chunks)
    def _(i):
        r = pl.multiple_of(i * chunk, chunk)
        x = x_ref[pl.ds(r, chunk), :].astype(jnp.float32)
        res = _mlp_chunk(wb, x, cc)
        yv = y_ref[pl.ds(r, chunk), :].astype(jnp.float32)
        res = res * yv if operator == '*' else res + yv
        o_ref[pl.ds(r, chunk), :] = res.astype(o_ref.dtype)


def _round_up(a, m):
    return -(-a // m) * m


def _fold_batch(a_bcn, rows, total_rows_padded):
    """(B, C, N) -> (C, total_rows_padded, 128).

    Pad each image to whole 128-lane rows, move channel outermost and stack
    every batch's rows so a single row tile spans batches (B leaves the grid).
    """
    B, C, N = a_bcn.shape
    pad = rows * LANES - N
    if pad:
        a_bcn = jnp.pad(a_bcn, ((0, 0), (0, 0), (0, pad)))
    a = (a_bcn.reshape(B, C, rows, LANES)
              .transpose(1, 0, 2, 3)
              .reshape(C, B * rows, LANES))
    if total_rows_padded != B * rows:
        a = jnp.pad(a, ((0, 0), (0, total_rows_padded - B * rows), (0, 0)))
    return a


def _rbf_pallas(x_bcn, params, y_bcn=None, operator='*',
                max_row_tile=MAX_ROW_TILE):
    """x_bcn / y_bcn: (B, C, N) in native NCHW-flattened layout."""
    B, C, N = x_bcn.shape
    cc = params[0].shape[1]
    params_flat, offs = pack_params(params)

    rows = -(-N // LANES)                      # per-image 128-lane rows
    total_rows = B * rows                      # batch folded into the row axis
    n_tiles = -(-total_rows // max_row_tile)
    tile_raw = -(-total_rows // n_tiles)       # balanced tile, no padded tail
    chunk = CHUNK_ROWS if tile_raw >= CHUNK_ROWS else 8
    row_tile = _round_up(tile_raw, chunk)
    total_rows_padded = n_tiles * row_tile

    x3 = _fold_batch(x_bcn, rows, total_rows_padded)
    # Lane-dense per-channel block; C is a squeezed grid axis.
    data_spec = pl.BlockSpec((None, row_tile, LANES),
                             lambda c, t, p: (c, t, 0))

    if y_bcn is None:
        kernel = functools.partial(_rbf_kernel, cc=cc, offs=offs, chunk=chunk)
        in_specs = [data_spec]
        inputs = (params_flat, x3)
        n_block_arrays = 2                     # x, out
    else:
        kernel = functools.partial(_rbf_combine_kernel, cc=cc, offs=offs,
                                   chunk=chunk, operator=operator)
        in_specs = [data_spec, data_spec]
        inputs = (params_flat, x3, _fold_batch(y_bcn, rows, total_rows_padded))
        n_block_arrays = 3                     # x, y, out

    # Deliberate VMEM budget: double-buffered blocks plus generous headroom
    # (intermediates are vreg-resident thanks to the chunk loop, so the
    # footprint does not scale with the elementwise chain).
    block_bytes = row_tile * LANES * 4
    vmem_limit = int(min(64 << 20, max(32 << 20, 8 * n_block_arrays * block_bytes)))

    out3 = pl.pallas_call(
        kernel,
        out_shape=jax.ShapeDtypeStruct((C, total_rows_padded, LANES),
                                       x_bcn.dtype),
        grid_spec=pltpu.PrefetchScalarGridSpec(
            num_scalar_prefetch=1,             # packed weights -> SMEM scalars
            grid=(C, n_tiles),
            in_specs=in_specs,
            out_specs=data_spec),
        compiler_params=pltpu.CompilerParams(
            dimension_semantics=("parallel", "parallel"),
            vmem_limit_bytes=vmem_limit),
    )(*inputs)

    out = out3[:, :B * rows, :].reshape(C, B, rows * LANES)[:, :, :N]
    return jnp.transpose(out, (1, 0, 2))       # (B, C, N)


def rbf_forward(x, params_c1, params_c2, y=None, operator='*'):
    """Matches Rbf.forward: y is None -> c1(x); else c2(x) * y (or + y)."""
    B, C, H, W = x.shape
    x_bcn = x.reshape(B, C, H * W)
    if y is None:
        out = _rbf_pallas(x_bcn, params_c1)
    else:
        out = _rbf_pallas(x_bcn, params_c2, y_bcn=y.reshape(B, C, H * W),
                          operator=operator)
    return out.reshape(B, C, H, W)


def init_branch_params(key, channel=CHANNEL, cc=CC, dtype=jnp.float32):
    """Grouped-conv weights stored per channel (group).  Deterministic init."""
    ks = jax.random.split(key, 10)

    def u(k, shape, fan_in):
        bound = 1.0 / (fan_in ** 0.5)
        return jax.random.uniform(k, shape, dtype, -bound, bound)

    w1 = u(ks[0], (channel, cc), 1)        # c(1, cc)
    b1 = u(ks[1], (channel, cc), 1)
    w2 = u(ks[2], (channel, cc, cc), cc)   # c(cc, cc)
    b2 = u(ks[3], (channel, cc), cc)
    w3 = u(ks[4], (channel, cc, cc), cc)
    b3 = u(ks[5], (channel, cc), cc)
    w4 = u(ks[6], (channel, cc, cc), cc)
    b4 = u(ks[7], (channel, cc), cc)
    w5 = u(ks[8], (channel, cc), cc)       # c(cc, 1)
    b5 = u(ks[9], (channel, 1), cc)
    return (w1, b1, w2, b2, w3, b3, w4, b4, w5, b5)


def rbf_reference(x, params, y=None, operator='*'):
    """Pure-JAX reference mirroring the PyTorch grouped 1x1 conv stack."""
    B, C, H, W = x.shape
    xc = jnp.transpose(x, (1, 0, 2, 3)).reshape(C, -1)
    w1, b1, w2, b2, w3, b3, w4, b4, w5, b5 = params
    h = _elu(w1[:, :, None] * xc[:, None, :] + b1[:, :, None])
    for w, b in ((w2, b2), (w3, b3), (w4, b4)):
        h = _elu(jnp.einsum('cij,cjn->cin', w, h) + b[:, :, None])
    out = jnp.einsum('cj,cjn->cn', w5, h) + b5
    out = jnp.transpose(out.reshape(C, B, H, W), (1, 0, 2, 3))
    if y is not None:
        out = out * y if operator == '*' else out + y
    return out


if __name__ == "__main__":
    key = jax.random.PRNGKey(0)
    kx, ky, k1, k2, kx2 = jax.random.split(key, 5)

    B, C, H, W = 2, CHANNEL, 16, 16
    x = jax.random.normal(kx, (B, C, H, W), jnp.float32)
    y = jax.random.normal(ky, (B, C, H, W), jnp.float32)

    params_c1 = init_branch_params(k1)
    params_c2 = init_branch_params(k2)

    # Path 1: y is None -> c1(x)
    out1 = jax.block_until_ready(rbf_forward(x, params_c1, params_c2))
    # Path 2: y given -> c2(x) * y
    out2 = jax.block_until_ready(
        rbf_forward(x, params_c1, params_c2, y=y, operator='*'))
    # Path 3: spatial size not a multiple of 128 exercises the cdiv/pad path.
    x3 = jax.random.normal(kx2, (B, C, 9, 9), jnp.float32)
    out3 = jax.block_until_ready(rbf_forward(x3, params_c1, params_c2))

    ref1 = rbf_reference(x, params_c1)
    ref2 = rbf_reference(x, params_c2, y=y, operator='*')
    ref3 = rbf_reference(x3, params_c1)

    assert out1.shape == x.shape and out2.shape == x.shape and out3.shape == x3.shape
    assert jnp.allclose(out1, ref1, atol=1e-5, rtol=1e-5)
    assert jnp.allclose(out2, ref2, atol=1e-5, rtol=1e-5)
    assert jnp.allclose(out3, ref3, atol=1e-5, rtol=1e-5)
    print("KERNEL_OK")
</pallas_src>

<mosaic_0001>
module attributes {stable_mosaic.version = 11 : i64} {
  func.func @_rbf_kernel(%arg0: i32, %arg1: i32, %arg2: memref<292xf32, #tpu.memory_space<smem>>, %arg3: memref<1x8x128xf32, #tpu.memory_space<vmem>>, %arg4: memref<1x8x128xf32, #tpu.memory_space<vmem>>) attributes {dimension_semantics = [#tpu.dimension_semantics<parallel>, #tpu.dimension_semantics<parallel>], iteration_bounds = array<i64: 4, 1>, scalar_prefetch = 1 : i64, scratch_operands = 0 : i64, tpu.core_type = #tpu.core_type<tc>, window_params = [{transform_indices = @transform_0, window_bounds = array<i64: 1, 8, 128>}, {transform_indices = @transform_1, window_bounds = array<i64: 1, 8, 128>}]} {
    %c4_i32 = arith.constant 4 : i32
    %0 = arith.muli %arg0, %c4_i32 : i32
    %c0_i32 = arith.constant 0 : i32
    %1 = arith.addi %c0_i32, %0 : i32
    %c0_i32_0 = arith.constant 0 : i32
    %2 = arith.addi %1, %c0_i32_0 : i32
    %3 = arith.index_cast %2 : i32 to index
    %4 = memref.load %arg2[%3] : memref<292xf32, #tpu.memory_space<smem>>
    %c4_i32_1 = arith.constant 4 : i32
    %5 = arith.muli %arg0, %c4_i32_1 : i32
    %c0_i32_2 = arith.constant 0 : i32
    %6 = arith.addi %c0_i32_2, %5 : i32
    %c1_i32 = arith.constant 1 : i32
    %7 = arith.addi %6, %c1_i32 : i32
    %8 = arith.index_cast %7 : i32 to index
    %9 = memref.load %arg2[%8] : memref<292xf32, #tpu.memory_space<smem>>
    %c4_i32_3 = arith.constant 4 : i32
    %10 = arith.muli %arg0, %c4_i32_3 : i32
    %c0_i32_4 = arith.constant 0 : i32
    %11 = arith.addi %c0_i32_4, %10 : i32
    %c2_i32 = arith.constant 2 : i32
    %12 = arith.addi %11, %c2_i32 : i32
    %13 = arith.index_cast %12 : i32 to index
    %14 = memref.load %arg2[%13] : memref<292xf32, #tpu.memory_space<smem>>
    %c4_i32_5 = arith.constant 4 : i32
    %15 = arith.muli %arg0, %c4_i32_5 : i32
    %c0_i32_6 = arith.constant 0 : i32
    %16 = arith.addi %c0_i32_6, %15 : i32
    %c3_i32 = arith.constant 3 : i32
    %17 = arith.addi %16, %c3_i32 : i32
    %18 = arith.index_cast %17 : i32 to index
    %19 = memref.load %arg2[%18] : memref<292xf32, #tpu.memory_space<smem>>
    %c4_i32_7 = arith.constant 4 : i32
    %20 = arith.muli %arg0, %c4_i32_7 : i32
    %c16_i32 = arith.constant 16 : i32
    %21 = arith.addi %c16_i32, %20 : i32
    %c0_i32_8 = arith.constant 0 : i32
    %22 = arith.addi %21, %c0_i32_8 : i32
    %23 = arith.index_cast %22 : i32 to index
    %24 = memref.load %arg2[%23] : memref<292xf32, #tpu.memory_space<smem>>
    %c4_i32_9 = arith.constant 4 : i32
    %25 = arith.muli %arg0, %c4_i32_9 : i32
    %c16_i32_10 = arith.constant 16 : i32
    %26 = arith.addi %c16_i32_10, %25 : i32
    %c1_i32_11 = arith.constant 1 : i32
    %27 = arith.addi %26, %c1_i32_11 : i32
    %28 = arith.index_cast %27 : i32 to index
    %29 = memref.load %arg2[%28] : memref<292xf32, #tpu.memory_space<smem>>
    %c4_i32_12 = arith.constant 4 : i32
    %30 = arith.muli %arg0, %c4_i32_12 : i32
    %c16_i32_13 = arith.constant 16 : i32
    %31 = arith.addi %c16_i32_13, %30 : i32
    %c2_i32_14 = arith.constant 2 : i32
    %32 = arith.addi %31, %c2_i32_14 : i32
    %33 = arith.index_cast %32 : i32 to index
    %34 = memref.load %arg2[%33] : memref<292xf32, #tpu.memory_space<smem>>
    %c4_i32_15 = arith.constant 4 : i32
    %35 = arith.muli %arg0, %c4_i32_15 : i32
    %c16_i32_16 = arith.constant 16 : i32
    %36 = arith.addi %c16_i32_16, %35 : i32
    %c3_i32_17 = arith.constant 3 : i32
    %37 = arith.addi %36, %c3_i32_17 : i32
    %38 = arith.index_cast %37 : i32 to index
    %39 = memref.load %arg2[%38] : memref<292xf32, #tpu.memory_space<smem>>
    %c4_i32_18 = arith.constant 4 : i32
    %40 = arith.muli %arg0, %c4_i32_18 : i32
    %c4_i32_19 = arith.constant 4 : i32
    %41 = arith.muli %40, %c4_i32_19 : i32
    %c32_i32 = arith.constant 32 : i32
    %42 = arith.addi %c32_i32, %41 : i32
    %c4_i32_20 = arith.constant 4 : i32
    %43 = arith.muli %arg0, %c4_i32_20 : i32
    %c96_i32 = arith.constant 96 : i32
    %44 = arith.addi %c96_i32, %43 : i32
    %c0_i32_21 = arith.constant 0 : i32
    %45 = arith.addi %42, %c0_i32_21 : i32
    %c0_i32_22 = arith.constant 0 : i32
    %46 = arith.addi %45, %c0_i32_22 : i32
    %47 = arith.index_cast %46 : i32 to index
    %48 = memref.load %arg2[%47] : memref<292xf32, #tpu.memory_space<smem>>
    %c0_i32_23 = arith.constant 0 : i32
    %49 = arith.addi %42, %c0_i32_23 : i32
    %c1_i32_24 = arith.constant 1 : i32
    %50 = arith.addi %49, %c1_i32_24 : i32
    %51 = arith.index_cast %50 : i32 to index
    %52 = memref.load %arg2[%51] : memref<292xf32, #tpu.memory_space<smem>>
    %c0_i32_25 = arith.constant 0 : i32
    %53 = arith.addi %42, %c0_i32_25 : i32
    %c2_i32_26 = arith.constant 2 : i32
    %54 = arith.addi %53, %c2_i32_26 : i32
    %55 = arith.index_cast %54 : i32 to index
    %56 = memref.load %arg2[%55] : memref<292xf32, #tpu.memory_space<smem>>
    %c0_i32_27 = arith.constant 0 : i32
    %57 = arith.addi %42, %c0_i32_27 : i32
    %c3_i32_28 = arith.constant 3 : i32
    %58 = arith.addi %57, %c3_i32_28 : i32
    %59 = arith.index_cast %58 : i32 to index
    %60 = memref.load %arg2[%59] : memref<292xf32, #tpu.memory_space<smem>>
    %c4_i32_29 = arith.constant 4 : i32
    %61 = arith.addi %42, %c4_i32_29 : i32
    %c0_i32_30 = arith.constant 0 : i32
    %62 = arith.addi %61, %c0_i32_30 : i32
    %63 = arith.index_cast %62 : i32 to index
    %64 = memref.load %arg2[%63] : memref<292xf32, #tpu.memory_space<smem>>
    %c4_i32_31 = arith.constant 4 : i32
    %65 = arith.addi %42, %c4_i32_31 : i32
    %c1_i32_32 = arith.constant 1 : i32
    %66 = arith.addi %65, %c1_i32_32 : i32
    %67 = arith.index_cast %66 : i32 to index
    %68 = memref.load %arg2[%67] : memref<292xf32, #tpu.memory_space<smem>>
    %c4_i32_33 = arith.constant 4 : i32
    %69 = arith.addi %42, %c4_i32_33 : i32
    %c2_i32_34 = arith.constant 2 : i32
    %70 = arith.addi %69, %c2_i32_34 : i32
    %71 = arith.index_cast %70 : i32 to index
    %72 = memref.load %arg2[%71] : memref<292xf32, #tpu.memory_space<smem>>
    %c4_i32_35 = arith.constant 4 : i32
    %73 = arith.addi %42, %c4_i32_35 : i32
    %c3_i32_36 = arith.constant 3 : i32
    %74 = arith.addi %73, %c3_i32_36 : i32
    %75 = arith.index_cast %74 : i32 to index
    %76 = memref.load %arg2[%75] : memref<292xf32, #tpu.memory_space<smem>>
    %c8_i32 = arith.constant 8 : i32
    %77 = arith.addi %42, %c8_i32 : i32
    %c0_i32_37 = arith.constant 0 : i32
    %78 = arith.addi %77, %c0_i32_37 : i32
    %79 = arith.index_cast %78 : i32 to index
    %80 = memref.load %arg2[%79] : memref<292xf32, #tpu.memory_space<smem>>
    %c8_i32_38 = arith.constant 8 : i32
    %81 = arith.addi %42, %c8_i32_38 : i32
    %c1_i32_39 = arith.constant 1 : i32
    %82 = arith.addi %81, %c1_i32_39 : i32
    %83 = arith.index_cast %82 : i32 to index
    %84 = memref.load %arg2[%83] : memref<292xf32, #tpu.memory_space<smem>>
    %c8_i32_40 = arith.constant 8 : i32
    %85 = arith.addi %42, %c8_i32_40 : i32
    %c2_i32_41 = arith.constant 2 : i32
    %86 = arith.addi %85, %c2_i32_41 : i32
    %87 = arith.index_cast %86 : i32 to index
    %88 = memref.load %arg2[%87] : memref<292xf32, #tpu.memory_space<smem>>
    %c8_i32_42 = arith.constant 8 : i32
    %89 = arith.addi %42, %c8_i32_42 : i32
    %c3_i32_43 = arith.constant 3 : i32
    %90 = arith.addi %89, %c3_i32_43 : i32
    %91 = arith.index_cast %90 : i32 to index
    %92 = memref.load %arg2[%91] : memref<292xf32, #tpu.memory_space<smem>>
    %c12_i32 = arith.constant 12 : i32
    %93 = arith.addi %42, %c12_i32 : i32
    %c0_i32_44 = arith.constant 0 : i32
    %94 = arith.addi %93, %c0_i32_44 : i32
    %95 = arith.index_cast %94 : i32 to index
    %96 = memref.load %arg2[%95] : memref<292xf32, #tpu.memory_space<smem>>
    %c12_i32_45 = arith.constant 12 : i32
    %97 = arith.addi %42, %c12_i32_45 : i32
    %c1_i32_46 = arith.constant 1 : i32
    %98 = arith.addi %97, %c1_i32_46 : i32
    %99 = arith.index_cast %98 : i32 to index
    %100 = memref.load %arg2[%99] : memref<292xf32, #tpu.memory_space<smem>>
    %c12_i32_47 = arith.constant 12 : i32
    %101 = arith.addi %42, %c12_i32_47 : i32
    %c2_i32_48 = arith.constant 2 : i32
    %102 = arith.addi %101, %c2_i32_48 : i32
    %103 = arith.index_cast %102 : i32 to index
    %104 = memref.load %arg2[%103] : memref<292xf32, #tpu.memory_space<smem>>
    %c12_i32_49 = arith.constant 12 : i32
    %105 = arith.addi %42, %c12_i32_49 : i32
    %c3_i32_50 = arith.constant 3 : i32
    %106 = arith.addi %105, %c3_i32_50 : i32
    %107 = arith.index_cast %106 : i32 to index
    %108 = memref.load %arg2[%107] : memref<292xf32, #tpu.memory_space<smem>>
    %c0_i32_51 = arith.constant 0 : i32
    %109 = arith.addi %44, %c0_i32_51 : i32
    %110 = arith.index_cast %109 : i32 to index
    %111 = memref.load %arg2[%110] : memref<292xf32, #tpu.memory_space<smem>>
    %c1_i32_52 = arith.constant 1 : i32
    %112 = arith.addi %44, %c1_i32_52 : i32
    %113 = arith.index_cast %112 : i32 to index
    %114 = memref.load %arg2[%113] : memref<292xf32, #tpu.memory_space<smem>>
    %c2_i32_53 = arith.constant 2 : i32
    %115 = arith.addi %44, %c2_i32_53 : i32
    %116 = arith.index_cast %115 : i32 to index
    %117 = memref.load %arg2[%116] : memref<292xf32, #tpu.memory_space<smem>>
    %c3_i32_54 = arith.constant 3 : i32
    %118 = arith.addi %44, %c3_i32_54 : i32
    %119 = arith.index_cast %118 : i32 to index
    %120 = memref.load %arg2[%119] : memref<292xf32, #tpu.memory_space<smem>>
    %c4_i32_55 = arith.constant 4 : i32
    %121 = arith.muli %arg0, %c4_i32_55 : i32
    %c4_i32_56 = arith.constant 4 : i32
    %122 = arith.muli %121, %c4_i32_56 : i32
    %c112_i32 = arith.constant 112 : i32
    %123 = arith.addi %c112_i32, %122 : i32
    %c4_i32_57 = arith.constant 4 : i32
    %124 = arith.muli %arg0, %c4_i32_57 : i32
    %c176_i32 = arith.constant 176 : i32
    %125 = arith.addi %c176_i32, %124 : i32
    %c0_i32_58 = arith.constant 0 : i32
    %126 = arith.addi %123, %c0_i32_58 : i32
    %c0_i32_59 = arith.constant 0 : i32
    %127 = arith.addi %126, %c0_i32_59 : i32
    %128 = arith.index_cast %127 : i32 to index
    %129 = memref.load %arg2[%128] : memref<292xf32, #tpu.memory_space<smem>>
    %c0_i32_60 = arith.constant 0 : i32
    %130 = arith.addi %123, %c0_i32_60 : i32
    %c1_i32_61 = arith.constant 1 : i32
    %131 = arith.addi %130, %c1_i32_61 : i32
    %132 = arith.index_cast %131 : i32 to index
    %133 = memref.load %arg2[%132] : memref<292xf32, #tpu.memory_space<smem>>
    %c0_i32_62 = arith.constant 0 : i32
    %134 = arith.addi %123, %c0_i32_62 : i32
    %c2_i32_63 = arith.constant 2 : i32
    %135 = arith.addi %134, %c2_i32_63 : i32
    %136 = arith.index_cast %135 : i32 to index
    %137 = memref.load %arg2[%136] : memref<292xf32, #tpu.memory_space<smem>>
    %c0_i32_64 = arith.constant 0 : i32
    %138 = arith.addi %123, %c0_i32_64 : i32
    %c3_i32_65 = arith.constant 3 : i32
    %139 = arith.addi %138, %c3_i32_65 : i32
    %140 = arith.index_cast %139 : i32 to index
    %141 = memref.load %arg2[%140] : memref<292xf32, #tpu.memory_space<smem>>
    %c4_i32_66 = arith.constant 4 : i32
    %142 = arith.addi %123, %c4_i32_66 : i32
    %c0_i32_67 = arith.constant 0 : i32
    %143 = arith.addi %142, %c0_i32_67 : i32
    %144 = arith.index_cast %143 : i32 to index
    %145 = memref.load %arg2[%144] : memref<292xf32, #tpu.memory_space<smem>>
    %c4_i32_68 = arith.constant 4 : i32
    %146 = arith.addi %123, %c4_i32_68 : i32
    %c1_i32_69 = arith.constant 1 : i32
    %147 = arith.addi %146, %c1_i32_69 : i32
    %148 = arith.index_cast %147 : i32 to index
    %149 = memref.load %arg2[%148] : memref<292xf32, #tpu.memory_space<smem>>
    %c4_i32_70 = arith.constant 4 : i32
    %150 = arith.addi %123, %c4_i32_70 : i32
    %c2_i32_71 = arith.constant 2 : i32
    %151 = arith.addi %150, %c2_i32_71 : i32
    %152 = arith.index_cast %151 : i32 to index
    %153 = memref.load %arg2[%152] : memref<292xf32, #tpu.memory_space<smem>>
    %c4_i32_72 = arith.constant 4 : i32
    %154 = arith.addi %123, %c4_i32_72 : i32
    %c3_i32_73 = arith.constant 3 : i32
    %155 = arith.addi %154, %c3_i32_73 : i32
    %156 = arith.index_cast %155 : i32 to index
    %157 = memref.load %arg2[%156] : memref<292xf32, #tpu.memory_space<smem>>
    %c8_i32_74 = arith.constant 8 : i32
    %158 = arith.addi %123, %c8_i32_74 : i32
    %c0_i32_75 = arith.constant 0 : i32
    %159 = arith.addi %158, %c0_i32_75 : i32
    %160 = arith.index_cast %159 : i32 to index
    %161 = memref.load %arg2[%160] : memref<292xf32, #tpu.memory_space<smem>>
    %c8_i32_76 = arith.constant 8 : i32
    %162 = arith.addi %123, %c8_i32_76 : i32
    %c1_i32_77 = arith.constant 1 : i32
    %163 = arith.addi %162, %c1_i32_77 : i32
    %164 = arith.index_cast %163 : i32 to index
    %165 = memref.load %arg2[%164] : memref<292xf32, #tpu.memory_space<smem>>
    %c8_i32_78 = arith.constant 8 : i32
    %166 = arith.addi %123, %c8_i32_78 : i32
    %c2_i32_79 = arith.constant 2 : i32
    %167 = arith.addi %166, %c2_i32_79 : i32
    %168 = arith.index_cast %167 : i32 to index
    %169 = memref.load %arg2[%168] : memref<292xf32, #tpu.memory_space<smem>>
    %c8_i32_80 = arith.constant 8 : i32
    %170 = arith.addi %123, %c8_i32_80 : i32
    %c3_i32_81 = arith.constant 3 : i32
    %171 = arith.addi %170, %c3_i32_81 : i32
    %172 = arith.index_cast %171 : i32 to index
    %173 = memref.load %arg2[%172] : memref<292xf32, #tpu.memory_space<smem>>
    %c12_i32_82 = arith.constant 12 : i32
    %174 = arith.addi %123, %c12_i32_82 : i32
    %c0_i32_83 = arith.constant 0 : i32
    %175 = arith.addi %174, %c0_i32_83 : i32
    %176 = arith.index_cast %175 : i32 to index
    %177 = memref.load %arg2[%176] : memref<292xf32, #tpu.memory_space<smem>>
    %c12_i32_84 = arith.constant 12 : i32
    %178 = arith.addi %123, %c12_i32_84 : i32
    %c1_i32_85 = arith.constant 1 : i32
    %179 = arith.addi %178, %c1_i32_85 : i32
    %180 = arith.index_cast %179 : i32 to index
    %181 = memref.load %arg2[%180] : memref<292xf32, #tpu.memory_space<smem>>
    %c12_i32_86 = arith.constant 12 : i32
    %182 = arith.addi %123, %c12_i32_86 : i32
    %c2_i32_87 = arith.constant 2 : i32
    %183 = arith.addi %182, %c2_i32_87 : i32
    %184 = arith.index_cast %183 : i32 to index
    %185 = memref.load %arg2[%184] : memref<292xf32, #tpu.memory_space<smem>>
    %c12_i32_88 = arith.constant 12 : i32
    %186 = arith.addi %123, %c12_i32_88 : i32
    %c3_i32_89 = arith.constant 3 : i32
    %187 = arith.addi %186, %c3_i32_89 : i32
    %188 = arith.index_cast %187 : i32 to index
    %189 = memref.load %arg2[%188] : memref<292xf32, #tpu.memory_space<smem>>
    %c0_i32_90 = arith.constant 0 : i32
    %190 = arith.addi %125, %c0_i32_90 : i32
    %191 = arith.index_cast %190 : i32 to index
    %192 = memref.load %arg2[%191] : memref<292xf32, #tpu.memory_space<smem>>
    %c1_i32_91 = arith.constant 1 : i32
    %193 = arith.addi %125, %c1_i32_91 : i32
    %194 = arith.index_cast %193 : i32 to index
    %195 = memref.load %arg2[%194] : memref<292xf32, #tpu.memory_space<smem>>
    %c2_i32_92 = arith.constant 2 : i32
    %196 = arith.addi %125, %c2_i32_92 : i32
    %197 = arith.index_cast %196 : i32 to index
    %198 = memref.load %arg2[%197] : memref<292xf32, #tpu.memory_space<smem>>
    %c3_i32_93 = arith.constant 3 : i32
    %199 = arith.addi %125, %c3_i32_93 : i32
    %200 = arith.index_cast %199 : i32 to index
    %201 = memref.load %arg2[%200] : memref<292xf32, #tpu.memory_space<smem>>
    %c4_i32_94 = arith.constant 4 : i32
    %202 = arith.muli %arg0, %c4_i32_94 : i32
    %c4_i32_95 = arith.constant 4 : i32
    %203 = arith.muli %202, %c4_i32_95 : i32
    %c192_i32 = arith.constant 192 : i32
    %204 = arith.addi %c192_i32, %203 : i32
    %c4_i32_96 = arith.constant 4 : i32
    %205 = arith.muli %arg0, %c4_i32_96 : i32
    %c256_i32 = arith.constant 256 : i32
    %206 = arith.addi %c256_i32, %205 : i32
    %c0_i32_97 = arith.constant 0 : i32
    %207 = arith.addi %204, %c0_i32_97 : i32
    %c0_i32_98 = arith.constant 0 : i32
    %208 = arith.addi %207, %c0_i32_98 : i32
    %209 = arith.index_cast %208 : i32 to index
    %210 = memref.load %arg2[%209] : memref<292xf32, #tpu.memory_space<smem>>
    %c0_i32_99 = arith.constant 0 : i32
    %211 = arith.addi %204, %c0_i32_99 : i32
    %c1_i32_100 = arith.constant 1 : i32
    %212 = arith.addi %211, %c1_i32_100 : i32
    %213 = arith.index_cast %212 : i32 to index
    %214 = memref.load %arg2[%213] : memref<292xf32, #tpu.memory_space<smem>>
    %c0_i32_101 = arith.constant 0 : i32
    %215 = arith.addi %204, %c0_i32_101 : i32
    %c2_i32_102 = arith.constant 2 : i32
    %216 = arith.addi %215, %c2_i32_102 : i32
    %217 = arith.index_cast %216 : i32 to index
    %218 = memref.load %arg2[%217] : memref<292xf32, #tpu.memory_space<smem>>
    %c0_i32_103 = arith.constant 0 : i32
    %219 = arith.addi %204, %c0_i32_103 : i32
    %c3_i32_104 = arith.constant 3 : i32
    %220 = arith.addi %219, %c3_i32_104 : i32
    %221 = arith.index_cast %220 : i32 to index
    %222 = memref.load %arg2[%221] : memref<292xf32, #tpu.memory_space<smem>>
    %c4_i32_105 = arith.constant 4 : i32
    %223 = arith.addi %204, %c4_i32_105 : i32
    %c0_i32_106 = arith.constant 0 : i32
    %224 = arith.addi %223, %c0_i32_106 : i32
    %225 = arith.index_cast %224 : i32 to index
    %226 = memref.load %arg2[%225] : memref<292xf32, #tpu.memory_space<smem>>
    %c4_i32_107 = arith.constant 4 : i32
    %227 = arith.addi %204, %c4_i32_107 : i32
    %c1_i32_108 = arith.constant 1 : i32
    %228 = arith.addi %227, %c1_i32_108 : i32
    %229 = arith.index_cast %228 : i32 to index
    %230 = memref.load %arg2[%229] : memref<292xf32, #tpu.memory_space<smem>>
    %c4_i32_109 = arith.constant 4 : i32
    %231 = arith.addi %204, %c4_i32_109 : i32
    %c2_i32_110 = arith.constant 2 : i32
    %232 = arith.addi %231, %c2_i32_110 : i32
    %233 = arith.index_cast %232 : i32 to index
    %234 = memref.load %arg2[%233] : memref<292xf32, #tpu.memory_space<smem>>
    %c4_i32_111 = arith.constant 4 : i32
    %235 = arith.addi %204, %c4_i32_111 : i32
    %c3_i32_112 = arith.constant 3 : i32
    %236 = arith.addi %235, %c3_i32_112 : i32
    %237 = arith.index_cast %236 : i32 to index
    %238 = memref.load %arg2[%237] : memref<292xf32, #tpu.memory_space<smem>>
    %c8_i32_113 = arith.constant 8 : i32
    %239 = arith.addi %204, %c8_i32_113 : i32
    %c0_i32_114 = arith.constant 0 : i32
    %240 = arith.addi %239, %c0_i32_114 : i32
    %241 = arith.index_cast %240 : i32 to index
    %242 = memref.load %arg2[%241] : memref<292xf32, #tpu.memory_space<smem>>
    %c8_i32_115 = arith.constant 8 : i32
    %243 = arith.addi %204, %c8_i32_115 : i32
    %c1_i32_116 = arith.constant 1 : i32
    %244 = arith.addi %243, %c1_i32_116 : i32
    %245 = arith.index_cast %244 : i32 to index
    %246 = memref.load %arg2[%245] : memref<292xf32, #tpu.memory_space<smem>>
    %c8_i32_117 = arith.constant 8 : i32
    %247 = arith.addi %204, %c8_i32_117 : i32
    %c2_i32_118 = arith.constant 2 : i32
    %248 = arith.addi %247, %c2_i32_118 : i32
    %249 = arith.index_cast %248 : i32 to index
    %250 = memref.load %arg2[%249] : memref<292xf32, #tpu.memory_space<smem>>
    %c8_i32_119 = arith.constant 8 : i32
    %251 = arith.addi %204, %c8_i32_119 : i32
    %c3_i32_120 = arith.constant 3 : i32
    %252 = arith.addi %251, %c3_i32_120 : i32
    %253 = arith.index_cast %252 : i32 to index
    %254 = memref.load %arg2[%253] : memref<292xf32, #tpu.memory_space<smem>>
    %c12_i32_121 = arith.constant 12 : i32
    %255 = arith.addi %204, %c12_i32_121 : i32
    %c0_i32_122 = arith.constant 0 : i32
    %256 = arith.addi %255, %c0_i32_122 : i32
    %257 = arith.index_cast %256 : i32 to index
    %258 = memref.load %arg2[%257] : memref<292xf32, #tpu.memory_space<smem>>
    %c12_i32_123 = arith.constant 12 : i32
    %259 = arith.addi %204, %c12_i32_123 : i32
    %c1_i32_124 = arith.constant 1 : i32
    %260 = arith.addi %259, %c1_i32_124 : i32
    %261 = arith.index_cast %260 : i32 to index
    %262 = memref.load %arg2[%261] : memref<292xf32, #tpu.memory_space<smem>>
    %c12_i32_125 = arith.constant 12 : i32
    %263 = arith.addi %204, %c12_i32_125 : i32
    %c2_i32_126 = arith.constant 2 : i32
    %264 = arith.addi %263, %c2_i32_126 : i32
    %265 = arith.index_cast %264 : i32 to index
    %266 = memref.load %arg2[%265] : memref<292xf32, #tpu.memory_space<smem>>
    %c12_i32_127 = arith.constant 12 : i32
    %267 = arith.addi %204, %c12_i32_127 : i32
    %c3_i32_128 = arith.constant 3 : i32
    %268 = arith.addi %267, %c3_i32_128 : i32
    %269 = arith.index_cast %268 : i32 to index
    %270 = memref.load %arg2[%269] : memref<292xf32, #tpu.memory_space<smem>>
    %c0_i32_129 = arith.constant 0 : i32
    %271 = arith.addi %206, %c0_i32_129 : i32
    %272 = arith.index_cast %271 : i32 to index
    %273 = memref.load %arg2[%272] : memref<292xf32, #tpu.memory_space<smem>>
    %c1_i32_130 = arith.constant 1 : i32
    %274 = arith.addi %206, %c1_i32_130 : i32
    %275 = arith.index_cast %274 : i32 to index
    %276 = memref.load %arg2[%275] : memref<292xf32, #tpu.memory_space<smem>>
    %c2_i32_131 = arith.constant 2 : i32
    %277 = arith.addi %206, %c2_i32_131 : i32
    %278 = arith.index_cast %277 : i32 to index
    %279 = memref.load %arg2[%278] : memref<292xf32, #tpu.memory_space<smem>>
    %c3_i32_132 = arith.constant 3 : i32
    %280 = arith.addi %206, %c3_i32_132 : i32
    %281 = arith.index_cast %280 : i32 to index
    %282 = memref.load %arg2[%281] : memref<292xf32, #tpu.memory_space<smem>>
    %c4_i32_133 = arith.constant 4 : i32
    %283 = arith.muli %arg0, %c4_i32_133 : i32
    %c272_i32 = arith.constant 272 : i32
    %284 = arith.addi %c272_i32, %283 : i32
    %c0_i32_134 = arith.constant 0 : i32
    %285 = arith.addi %284, %c0_i32_134 : i32
    %286 = arith.index_cast %285 : i32 to index
    %287 = memref.load %arg2[%286] : memref<292xf32, #tpu.memory_space<smem>>
    %c4_i32_135 = arith.constant 4 : i32
    %288 = arith.muli %arg0, %c4_i32_135 : i32
    %c272_i32_136 = arith.constant 272 : i32
    %289 = arith.addi %c272_i32_136, %288 : i32
    %c1_i32_137 = arith.constant 1 : i32
    %290 = arith.addi %289, %c1_i32_137 : i32
    %291 = arith.index_cast %290 : i32 to index
    %292 = memref.load %arg2[%291] : memref<292xf32, #tpu.memory_space<smem>>
    %c4_i32_138 = arith.constant 4 : i32
    %293 = arith.muli %arg0, %c4_i32_138 : i32
    %c272_i32_139 = arith.constant 272 : i32
    %294 = arith.addi %c272_i32_139, %293 : i32
    %c2_i32_140 = arith.constant 2 : i32
    %295 = arith.addi %294, %c2_i32_140 : i32
    %296 = arith.index_cast %295 : i32 to index
    %297 = memref.load %arg2[%296] : memref<292xf32, #tpu.memory_space<smem>>
    %c4_i32_141 = arith.constant 4 : i32
    %298 = arith.muli %arg0, %c4_i32_141 : i32
    %c272_i32_142 = arith.constant 272 : i32
    %299 = arith.addi %c272_i32_142, %298 : i32
    %c3_i32_143 = arith.constant 3 : i32
    %300 = arith.addi %299, %c3_i32_143 : i32
    %301 = arith.index_cast %300 : i32 to index
    %302 = memref.load %arg2[%301] : memref<292xf32, #tpu.memory_space<smem>>
    %c288_i32 = arith.constant 288 : i32
    %303 = arith.addi %c288_i32, %arg0 : i32
    %304 = arith.index_cast %303 : i32 to index
    %305 = memref.load %arg2[%304] : memref<292xf32, #tpu.memory_space<smem>>
    %c0_i32_144 = arith.constant 0 : i32
    %c1_i32_145 = arith.constant 1 : i32
    %306 = arith.muli %c0_i32_144, %c1_i32_145 : i32
    %c0_i32_146 = arith.constant 0 : i32
    %307 = arith.addi %c0_i32_146, %306 : i32
    %c8_i32_147 = arith.constant 8 : i32
    %308 = arith.muli %307, %c8_i32_147 : i32
    %309 = tpu.assume_multiple %308, 8 : i32
    %c0 = arith.constant 0 : index
    %310 = arith.index_cast %309 : i32 to index
    %c0_148 = arith.constant 0 : index
    %311 = vector.load %arg3[%c0, %310, %c0_148] : memref<1x8x128xf32, #tpu.memory_space<vmem>>, vector<1x8x128xf32>
    %312 = vector.shape_cast %311 : vector<1x8x128xf32> to vector<8x128xf32>
    %313 = vector.broadcast %4 : f32 to vector<8x128xf32>
    %314 = arith.mulf %313, %312 : vector<8x128xf32>
    %315 = vector.broadcast %24 : f32 to vector<8x128xf32>
    %316 = arith.addf %314, %315 : vector<8x128xf32>
    %cst = arith.constant 0.000000e+00 : f32
    %317 = vector.broadcast %cst : f32 to vector<8x128xf32>
    %318 = arith.cmpf ogt, %316, %317 : vector<8x128xf32>
    %319 = math.exp %316 : vector<8x128xf32>
    %cst_149 = arith.constant 1.000000e+00 : f32
    %320 = vector.broadcast %cst_149 : f32 to vector<8x128xf32>
    %321 = arith.subf %319, %320 : vector<8x128xf32>
    %322 = arith.select %318, %316, %321 : vector<8x128xi1>, vector<8x128xf32>
    %323 = vector.broadcast %9 : f32 to vector<8x128xf32>
    %324 = arith.mulf %323, %312 : vector<8x128xf32>
    %325 = vector.broadcast %29 : f32 to vector<8x128xf32>
    %326 = arith.addf %324, %325 : vector<8x128xf32>
    %cst_150 = arith.constant 0.000000e+00 : f32
    %327 = vector.broadcast %cst_150 : f32 to vector<8x128xf32>
    %328 = arith.cmpf ogt, %326, %327 : vector<8x128xf32>
    %329 = math.exp %326 : vector<8x128xf32>
    %cst_151 = arith.constant 1.000000e+00 : f32
    %330 = vector.broadcast %cst_151 : f32 to vector<8x128xf32>
    %331 = arith.subf %329, %330 : vector<8x128xf32>
    %332 = arith.select %328, %326, %331 : vector<8x128xi1>, vector<8x128xf32>
    %333 = vector.broadcast %14 : f32 to vector<8x128xf32>
    %334 = arith.mulf %333, %312 : vector<8x128xf32>
    %335 = vector.broadcast %34 : f32 to vector<8x128xf32>
    %336 = arith.addf %334, %335 : vector<8x128xf32>
    %cst_152 = arith.constant 0.000000e+00 : f32
    %337 = vector.broadcast %cst_152 : f32 to vector<8x128xf32>
    %338 = arith.cmpf ogt, %336, %337 : vector<8x128xf32>
    %339 = math.exp %336 : vector<8x128xf32>
    %cst_153 = arith.constant 1.000000e+00 : f32
    %340 = vector.broadcast %cst_153 : f32 to vector<8x128xf32>
    %341 = arith.subf %339, %340 : vector<8x128xf32>
    %342 = arith.select %338, %336, %341 : vector<8x128xi1>, vector<8x128xf32>
    %343 = vector.broadcast %19 : f32 to vector<8x128xf32>
    %344 = arith.mulf %343, %312 : vector<8x128xf32>
    %345 = vector.broadcast %39 : f32 to vector<8x128xf32>
    %346 = arith.addf %344, %345 : vector<8x128xf32>
    %cst_154 = arith.constant 0.000000e+00 : f32
    %347 = vector.broadcast %cst_154 : f32 to vector<8x128xf32>
    %348 = arith.cmpf ogt, %346, %347 : vector<8x128xf32>
    %349 = math.exp %346 : vector<8x128xf32>
    %cst_155 = arith.constant 1.000000e+00 : f32
    %350 = vector.broadcast %cst_155 : f32 to vector<8x128xf32>
    %351 = arith.subf %349, %350 : vector<8x128xf32>
    %352 = arith.select %348, %346, %351 : vector<8x128xi1>, vector<8x128xf32>
    %353 = vector.broadcast %48 : f32 to vector<8x128xf32>
    %354 = arith.mulf %353, %322 : vector<8x128xf32>
    %355 = vector.broadcast %52 : f32 to vector<8x128xf32>
    %356 = arith.mulf %355, %332 : vector<8x128xf32>
    %357 = arith.addf %354, %356 : vector<8x128xf32>
    %358 = vector.broadcast %56 : f32 to vector<8x128xf32>
    %359 = arith.mulf %358, %342 : vector<8x128xf32>
    %360 = arith.addf %357, %359 : vector<8x128xf32>
    %361 = vector.broadcast %60 : f32 to vector<8x128xf32>
    %362 = arith.mulf %361, %352 : vector<8x128xf32>
    %363 = arith.addf %360, %362 : vector<8x128xf32>
    %364 = vector.broadcast %111 : f32 to vector<8x128xf32>
    %365 = arith.addf %363, %364 : vector<8x128xf32>
    %cst_156 = arith.constant 0.000000e+00 : f32
    %366 = vector.broadcast %cst_156 : f32 to vector<8x128xf32>
    %367 = arith.cmpf ogt, %365, %366 : vector<8x128xf32>
    %368 = math.exp %365 : vector<8x128xf32>
    %cst_157 = arith.constant 1.000000e+00 : f32
    %369 = vector.broadcast %cst_157 : f32 to vector<8x128xf32>
    %370 = arith.subf %368, %369 : vector<8x128xf32>
    %371 = arith.select %367, %365, %370 : vector<8x128xi1>, vector<8x128xf32>
    %372 = vector.broadcast %64 : f32 to vector<8x128xf32>
    %373 = arith.mulf %372, %322 : vector<8x128xf32>
    %374 = vector.broadcast %68 : f32 to vector<8x128xf32>
    %375 = arith.mulf %374, %332 : vector<8x128xf32>
    %376 = arith.addf %373, %375 : vector<8x128xf32>
    %377 = vector.broadcast %72 : f32 to vector<8x128xf32>
    %378 = arith.mulf %377, %342 : vector<8x128xf32>
    %379 = arith.addf %376, %378 : vector<8x128xf32>
    %380 = vector.broadcast %76 : f32 to vector<8x128xf32>
    %381 = arith.mulf %380, %352 : vector<8x128xf32>
    %382 = arith.addf %379, %381 : vector<8x128xf32>
    %383 = vector.broadcast %114 : f32 to vector<8x128xf32>
    %384 = arith.addf %382, %383 : vector<8x128xf32>
    %cst_158 = arith.constant 0.000000e+00 : f32
    %385 = vector.broadcast %cst_158 : f32 to vector<8x128xf32>
    %386 = arith.cmpf ogt, %384, %385 : vector<8x128xf32>
    %387 = math.exp %384 : vector<8x128xf32>
    %cst_159 = arith.constant 1.000000e+00 : f32
    %388 = vector.broadcast %cst_159 : f32 to vector<8x128xf32>
    %389 = arith.subf %387, %388 : vector<8x128xf32>
    %390 = arith.select %386, %384, %389 : vector<8x128xi1>, vector<8x128xf32>
    %391 = vector.broadcast %80 : f32 to vector<8x128xf32>
    %392 = arith.mulf %391, %322 : vector<8x128xf32>
    %393 = vector.broadcast %84 : f32 to vector<8x128xf32>
    %394 = arith.mulf %393, %332 : vector<8x128xf32>
    %395 = arith.addf %392, %394 : vector<8x128xf32>
    %396 = vector.broadcast %88 : f32 to vector<8x128xf32>
    %397 = arith.mulf %396, %342 : vector<8x128xf32>
    %398 = arith.addf %395, %397 : vector<8x128xf32>
    %399 = vector.broadcast %92 : f32 to vector<8x128xf32>
    %400 = arith.mulf %399, %352 : vector<8x128xf32>
    %401 = arith.addf %398, %400 : vector<8x128xf32>
    %402 = vector.broadcast %117 : f32 to vector<8x128xf32>
    %403 = arith.addf %401, %402 : vector<8x128xf32>
    %cst_160 = arith.constant 0.000000e+00 : f32
    %404 = vector.broadcast %cst_160 : f32 to vector<8x128xf32>
    %405 = arith.cmpf ogt, %403, %404 : vector<8x128xf32>
    %406 = math.exp %403 : vector<8x128xf32>
    %cst_161 = arith.constant 1.000000e+00 : f32
    %407 = vector.broadcast %cst_161 : f32 to vector<8x128xf32>
    %408 = arith.subf %406, %407 : vector<8x128xf32>
    %409 = arith.select %405, %403, %408 : vector<8x128xi1>, vector<8x128xf32>
    %410 = vector.broadcast %96 : f32 to vector<8x128xf32>
    %411 = arith.mulf %410, %322 : vector<8x128xf32>
    %412 = vector.broadcast %100 : f32 to vector<8x128xf32>
    %413 = arith.mulf %412, %332 : vector<8x128xf32>
    %414 = arith.addf %411, %413 : vector<8x128xf32>
    %415 = vector.broadcast %104 : f32 to vector<8x128xf32>
    %416 = arith.mulf %415, %342 : vector<8x128xf32>
    %417 = arith.addf %414, %416 : vector<8x128xf32>
    %418 = vector.broadcast %108 : f32 to vector<8x128xf32>
    %419 = arith.mulf %418, %352 : vector<8x128xf32>
    %420 = arith.addf %417, %419 : vector<8x128xf32>
    %421 = vector.broadcast %120 : f32 to vector<8x128xf32>
    %422 = arith.addf %420, %421 : vector<8x128xf32>
    %cst_162 = arith.constant 0.000000e+00 : f32
    %423 = vector.broadcast %cst_162 : f32 to vector<8x128xf32>
    %424 = arith.cmpf ogt, %422, %423 : vector<8x128xf32>
    %425 = math.exp %422 : vector<8x128xf32>
    %cst_163 = arith.constant 1.000000e+00 : f32
    %426 = vector.broadcast %cst_163 : f32 to vector<8x128xf32>
    %427 = arith.subf %425, %426 : vector<8x128xf32>
    %428 = arith.select %424, %422, %427 : vector<8x128xi1>, vector<8x128xf32>
    %429 = vector.broadcast %129 : f32 to vector<8x128xf32>
    %430 = arith.mulf %429, %371 : vector<8x128xf32>
    %431 = vector.broadcast %133 : f32 to vector<8x128xf32>
    %432 = arith.mulf %431, %390 : vector<8x128xf32>
    %433 = arith.addf %430, %432 : vector<8x128xf32>
    %434 = vector.broadcast %137 : f32 to vector<8x128xf32>
    %435 = arith.mulf %434, %409 : vector<8x128xf32>
    %436 = arith.addf %433, %435 : vector<8x128xf32>
    %437 = vector.broadcast %141 : f32 to vector<8x128xf32>
    %438 = arith.mulf %437, %428 : vector<8x128xf32>
    %439 = arith.addf %436, %438 : vector<8x128xf32>
    %440 = vector.broadcast %192 : f32 to vector<8x128xf32>
    %441 = arith.addf %439, %440 : vector<8x128xf32>
    %cst_164 = arith.constant 0.000000e+00 : f32
    %442 = vector.broadcast %cst_164 : f32 to vector<8x128xf32>
    %443 = arith.cmpf ogt, %441, %442 : vector<8x128xf32>
    %444 = math.exp %441 : vector<8x128xf32>
    %cst_165 = arith.constant 1.000000e+00 : f32
    %445 = vector.broadcast %cst_165 : f32 to vector<8x128xf32>
    %446 = arith.subf %444, %445 : vector<8x128xf32>
    %447 = arith.select %443, %441, %446 : vector<8x128xi1>, vector<8x128xf32>
    %448 = vector.broadcast %145 : f32 to vector<8x128xf32>
    %449 = arith.mulf %448, %371 : vector<8x128xf32>
    %450 = vector.broadcast %149 : f32 to vector<8x128xf32>
    %451 = arith.mulf %450, %390 : vector<8x128xf32>
    %452 = arith.addf %449, %451 : vector<8x128xf32>
    %453 = vector.broadcast %153 : f32 to vector<8x128xf32>
    %454 = arith.mulf %453, %409 : vector<8x128xf32>
    %455 = arith.addf %452, %454 : vector<8x128xf32>
    %456 = vector.broadcast %157 : f32 to vector<8x128xf32>
    %457 = arith.mulf %456, %428 : vector<8x128xf32>
    %458 = arith.addf %455, %457 : vector<8x128xf32>
    %459 = vector.broadcast %195 : f32 to vector<8x128xf32>
    %460 = arith.addf %458, %459 : vector<8x128xf32>
    %cst_166 = arith.constant 0.000000e+00 : f32
    %461 = vector.broadcast %cst_166 : f32 to vector<8x128xf32>
    %462 = arith.cmpf ogt, %460, %461 : vector<8x128xf32>
    %463 = math.exp %460 : vector<8x128xf32>
    %cst_167 = arith.constant 1.000000e+00 : f32
    %464 = vector.broadcast %cst_167 : f32 to vector<8x128xf32>
    %465 = arith.subf %463, %464 : vector<8x128xf32>
    %466 = arith.select %462, %460, %465 : vector<8x128xi1>, vector<8x128xf32>
    %467 = vector.broadcast %161 : f32 to vector<8x128xf32>
    %468 = arith.mulf %467, %371 : vector<8x128xf32>
    %469 = vector.broadcast %165 : f32 to vector<8x128xf32>
    %470 = arith.mulf %469, %390 : vector<8x128xf32>
    %471 = arith.addf %468, %470 : vector<8x128xf32>
    %472 = vector.broadcast %169 : f32 to vector<8x128xf32>
    %473 = arith.mulf %472, %409 : vector<8x128xf32>
    %474 = arith.addf %471, %473 : vector<8x128xf32>
    %475 = vector.broadcast %173 : f32 to vector<8x128xf32>
    %476 = arith.mulf %475, %428 : vector<8x128xf32>
    %477 = arith.addf %474, %476 : vector<8x128xf32>
    %478 = vector.broadcast %198 : f32 to vector<8x128xf32>
    %479 = arith.addf %477, %478 : vector<8x128xf32>
    %cst_168 = arith.constant 0.000000e+00 : f32
    %480 = vector.broadcast %cst_168 : f32 to vector<8x128xf32>
    %481 = arith.cmpf ogt, %479, %480 : vector<8x128xf32>
    %482 = math.exp %479 : vector<8x128xf32>
    %cst_169 = arith.constant 1.000000e+00 : f32
    %483 = vector.broadcast %cst_169 : f32 to vector<8x128xf32>
    %484 = arith.subf %482, %483 : vector<8x128xf32>
    %485 = arith.select %481, %479, %484 : vector<8x128xi1>, vector<8x128xf32>
    %486 = vector.broadcast %177 : f32 to vector<8x128xf32>
    %487 = arith.mulf %486, %371 : vector<8x128xf32>
    %488 = vector.broadcast %181 : f32 to vector<8x128xf32>
    %489 = arith.mulf %488, %390 : vector<8x128xf32>
    %490 = arith.addf %487, %489 : vector<8x128xf32>
    %491 = vector.broadcast %185 : f32 to vector<8x128xf32>
    %492 = arith.mulf %491, %409 : vector<8x128xf32>
    %493 = arith.addf %490, %492 : vector<8x128xf32>
    %494 = vector.broadcast %189 : f32 to vector<8x128xf32>
    %495 = arith.mulf %494, %428 : vector<8x128xf32>
    %496 = arith.addf %493, %495 : vector<8x128xf32>
    %497 = vector.broadcast %201 : f32 to vector<8x128xf32>
    %498 = arith.addf %496, %497 : vector<8x128xf32>
    %cst_170 = arith.constant 0.000000e+00 : f32
    %499 = vector.broadcast %cst_170 : f32 to vector<8x128xf32>
    %500 = arith.cmpf ogt, %498, %499 : vector<8x128xf32>
    %501 = math.exp %498 : vector<8x128xf32>
    %cst_171 = arith.constant 1.000000e+00 : f32
    %502 = vector.broadcast %cst_171 : f32 to vector<8x128xf32>
    %503 = arith.subf %501, %502 : vector<8x128xf32>
    %504 = arith.select %500, %498, %503 : vector<8x128xi1>, vector<8x128xf32>
    %505 = vector.broadcast %210 : f32 to vector<8x128xf32>
    %506 = arith.mulf %505, %447 : vector<8x128xf32>
    %507 = vector.broadcast %214 : f32 to vector<8x128xf32>
    %508 = arith.mulf %507, %466 : vector<8x128xf32>
    %509 = arith.addf %506, %508 : vector<8x128xf32>
    %510 = vector.broadcast %218 : f32 to vector<8x128xf32>
    %511 = arith.mulf %510, %485 : vector<8x128xf32>
    %512 = arith.addf %509, %511 : vector<8x128xf32>
    %513 = vector.broadcast %222 : f32 to vector<8x128xf32>
    %514 = arith.mulf %513, %504 : vector<8x128xf32>
    %515 = arith.addf %512, %514 : vector<8x128xf32>
    %516 = vector.broadcast %273 : f32 to vector<8x128xf32>
    %517 = arith.addf %515, %516 : vector<8x128xf32>
    %cst_172 = arith.constant 0.000000e+00 : f32
    %518 = vector.broadcast %cst_172 : f32 to vector<8x128xf32>
    %519 = arith.cmpf ogt, %517, %518 : vector<8x128xf32>
    %520 = math.exp %517 : vector<8x128xf32>
    %cst_173 = arith.constant 1.000000e+00 : f32
    %521 = vector.broadcast %cst_173 : f32 to vector<8x128xf32>
    %522 = arith.subf %520, %521 : vector<8x128xf32>
    %523 = arith.select %519, %517, %522 : vector<8x128xi1>, vector<8x128xf32>
    %524 = vector.broadcast %226 : f32 to vector<8x128xf32>
    %525 = arith.mulf %524, %447 : vector<8x128xf32>
    %526 = vector.broadcast %230 : f32 to vector<8x128xf32>
    %527 = arith.mulf %526, %466 : vector<8x128xf32>
    %528 = arith.addf %525, %527 : vector<8x128xf32>
    %529 = vector.broadcast %234 : f32 to vector<8x128xf32>
    %530 = arith.mulf %529, %485 : vector<8x128xf32>
    %531 = arith.addf %528, %530 : vector<8x128xf32>
    %532 = vector.broadcast %238 : f32 to vector<8x128xf32>
    %533 = arith.mulf %532, %504 : vector<8x128xf32>
    %534 = arith.addf %531, %533 : vector<8x128xf32>
    %535 = vector.broadcast %276 : f32 to vector<8x128xf32>
    %536 = arith.addf %534, %535 : vector<8x128xf32>
    %cst_174 = arith.constant 0.000000e+00 : f32
    %537 = vector.broadcast %cst_174 : f32 to vector<8x128xf32>
    %538 = arith.cmpf ogt, %536, %537 : vector<8x128xf32>
    %539 = math.exp %536 : vector<8x128xf32>
    %cst_175 = arith.constant 1.000000e+00 : f32
    %540 = vector.broadcast %cst_175 : f32 to vector<8x128xf32>
    %541 = arith.subf %539, %540 : vector<8x128xf32>
    %542 = arith.select %538, %536, %541 : vector<8x128xi1>, vector<8x128xf32>
    %543 = vector.broadcast %242 : f32 to vector<8x128xf32>
    %544 = arith.mulf %543, %447 : vector<8x128xf32>
    %545 = vector.broadcast %246 : f32 to vector<8x128xf32>
    %546 = arith.mulf %545, %466 : vector<8x128xf32>
    %547 = arith.addf %544, %546 : vector<8x128xf32>
    %548 = vector.broadcast %250 : f32 to vector<8x128xf32>
    %549 = arith.mulf %548, %485 : vector<8x128xf32>
    %550 = arith.addf %547, %549 : vector<8x128xf32>
    %551 = vector.broadcast %254 : f32 to vector<8x128xf32>
    %552 = arith.mulf %551, %504 : vector<8x128xf32>
    %553 = arith.addf %550, %552 : vector<8x128xf32>
    %554 = vector.broadcast %279 : f32 to vector<8x128xf32>
    %555 = arith.addf %553, %554 : vector<8x128xf32>
    %cst_176 = arith.constant 0.000000e+00 : f32
    %556 = vector.broadcast %cst_176 : f32 to vector<8x128xf32>
    %557 = arith.cmpf ogt, %555, %556 : vector<8x128xf32>
    %558 = math.exp %555 : vector<8x128xf32>
    %cst_177 = arith.constant 1.000000e+00 : f32
    %559 = vector.broadcast %cst_177 : f32 to vector<8x128xf32>
    %560 = arith.subf %558, %559 : vector<8x128xf32>
    %561 = arith.select %557, %555, %560 : vector<8x128xi1>, vector<8x128xf32>
    %562 = vector.broadcast %258 : f32 to vector<8x128xf32>
    %563 = arith.mulf %562, %447 : vector<8x128xf32>
    %564 = vector.broadcast %262 : f32 to vector<8x128xf32>
    %565 = arith.mulf %564, %466 : vector<8x128xf32>
    %566 = arith.addf %563, %565 : vector<8x128xf32>
    %567 = vector.broadcast %266 : f32 to vector<8x128xf32>
    %568 = arith.mulf %567, %485 : vector<8x128xf32>
    %569 = arith.addf %566, %568 : vector<8x128xf32>
    %570 = vector.broadcast %270 : f32 to vector<8x128xf32>
    %571 = arith.mulf %570, %504 : vector<8x128xf32>
    %572 = arith.addf %569, %571 : vector<8x128xf32>
    %573 = vector.broadcast %282 : f32 to vector<8x128xf32>
    %574 = arith.addf %572, %573 : vector<8x128xf32>
    %cst_178 = arith.constant 0.000000e+00 : f32
    %575 = vector.broadcast %cst_178 : f32 to vector<8x128xf32>
    %576 = arith.cmpf ogt, %574, %575 : vector<8x128xf32>
    %577 = math.exp %574 : vector<8x128xf32>
    %cst_179 = arith.constant 1.000000e+00 : f32
    %578 = vector.broadcast %cst_179 : f32 to vector<8x128xf32>
    %579 = arith.subf %577, %578 : vector<8x128xf32>
    %580 = arith.select %576, %574, %579 : vector<8x128xi1>, vector<8x128xf32>
    %581 = vector.broadcast %287 : f32 to vector<8x128xf32>
    %582 = arith.mulf %581, %523 : vector<8x128xf32>
    %583 = vector.broadcast %292 : f32 to vector<8x128xf32>
    %584 = arith.mulf %583, %542 : vector<8x128xf32>
    %585 = arith.addf %582, %584 : vector<8x128xf32>
    %586 = vector.broadcast %297 : f32 to vector<8x128xf32>
    %587 = arith.mulf %586, %561 : vector<8x128xf32>
    %588 = arith.addf %585, %587 : vector<8x128xf32>
    %589 = vector.broadcast %302 : f32 to vector<8x128xf32>
    %590 = arith.mulf %589, %580 : vector<8x128xf32>
    %591 = arith.addf %588, %590 : vector<8x128xf32>
    %592 = vector.broadcast %305 : f32 to vector<8x128xf32>
    %593 = arith.addf %591, %592 : vector<8x128xf32>
    %c0_180 = arith.constant 0 : index
    %594 = arith.index_cast %309 : i32 to index
    %c0_181 = arith.constant 0 : index
    %595 = vector.load %arg4[%c0_180, %594, %c0_181] : memref<1x8x128xf32, #tpu.memory_space<vmem>>, vector<1x8x128xf32>
    %596 = vector.shape_cast %595 : vector<1x8x128xf32> to vector<8x128xf32>
    %597 = vector.shape_cast %593 : vector<8x128xf32> to vector<1x8x128xf32>
    tpu.vector_store %arg4[%c0_180, %594, %c0_181], %597 {strides = array<i32>} : memref<1x8x128xf32, #tpu.memory_space<vmem>>, vector<1x8x128xf32>,
    %c1_i32_182 = arith.constant 1 : i32
    return
  }
  func.func @transform_0(%arg0: i32, %arg1: i32, %arg2: memref<292xf32, #tpu.memory_space<smem>>) -> (i32, i32, i32) {
    %c0_i32 = arith.constant 0 : i32
    %c0_i32_0 = arith.constant 0 : i32
    return %arg0, %arg1, %c0_i32 : i32, i32, i32
  }
  func.func @transform_1(%arg0: i32, %arg1: i32, %arg2: memref<292xf32, #tpu.memory_space<smem>>) -> (i32, i32, i32) {
    %c0_i32 = arith.constant 0 : i32
    %c0_i32_0 = arith.constant 0 : i32
    return %arg0, %arg1, %c0_i32 : i32, i32, i32
  }
}

</mosaic_0001>

<llo_original>
// kernel: tpu_custom_call.1
$region0: #{tpu_custom_call.1}
  #allocation0 [shape = 'u32[]', space=smem, size = 0x4, offset = 0x4, fixed_abs, tag = 'smem constant byte address 0x4 - core index']
  #allocation1 [shape = 'u32[144,128]{1,0:T(1,128)}', space=vmem, size = 0x12000, scoped, tag = 'internal scratch']
  #allocation2 [shape = 's32[1]{0}', space=sflag, size = 0x4, scoped, tag = 'scoped memory for tpu_custom_call.1']
  #allocation3 [shape = 'u8[1536]{0}', space=smem, size = 0x600, scoped, tag = 'prefetched SMEM operand 0']
  %s0 = inlined_call_operand.hbm [shape: f32[292], index: 0, kind: input, shape index: {}]
  %s1 = inlined_call_operand.hbm [shape: f32[4,8,128], index: 1, kind: input, shape index: {}]
  %s2 = inlined_call_operand.hbm [shape: f32[4,8,128], index: 2, kind: output, shape index: {}]
  %s3 = sld [smem:[#allocation0]]
  $region41: #{tpu_custom_call.1} parent=0
    _
  %s5 = ssub.s32 1, %s3
  %s6 = scalar_select 0, %s5, %s3
  %8 = dma.hbm_to_smem %s0, 48, [#allocation3], [#allocation2]
  %9 = dma.done [#allocation2], 48
  %10 = sfence
  $region1: #{tpu_custom_call.1} parent=0
    #allocation4 [shape = 'u8[8192]{0}', space=vmem, size = 0x2000, scoped, tag = 'input window, operand 1']
    #allocation5 [shape = 's32[2]{0}', space=sflag, size = 0x8, scoped, tag = 'scoped memory for tpu_custom_call.1']
    #allocation6 [shape = 's32[2]{0}', space=sflag, size = 0x8, scoped, tag = 'scoped memory for tpu_custom_call.1']
    #allocation7 [shape = 'u8[8192]{0}', space=vmem, size = 0x2000, scoped, tag = 'output window, operand 0']
    %11 = vsyncpa [#allocation5], 0
    %s12 = scalar_lea.sflag [#allocation5], 1
    %13 = vsyncpa %s12, 0
    %14 = vsyncpa [#allocation6], 0
    %s15 = scalar_lea.sflag [#allocation6], 1
    %16 = vsyncpa %s15, 0
    loop: start=0, step=1, limit=6
    $region2: #{tpu_custom_call.1} parent=1 // loop_pre_header
      _
    $region3: #{tpu_custom_call.1} parent=1 // loop_header
      %s18 = sphi 0, %s22
      %p19 = scmp.ge.s32.totalorder %s18, 6
      %s25 = sphi 0, %s37
      %s26 = sphi 0, %s33
      %s27 = sphi 0, %s25
      %s28 = sphi 0, %s26
      %s29 = sphi 0, %s27
      %s30 = sphi 0, %s28
      %s42 = sphi 0, %s44
      %s45 = sphi 0, %s42
      %s46 = sphi 0, %s45
      %s62 = sphi 0, %s46
      %s70 = sphi 0, %s72
      %s73 = sphi 0, %s70
      %s74 = sphi 0, %s73
      %s90 = sphi 0, %s74
    $region4: #{tpu_custom_call.1} parent=1 // loop_header_branch
      %21 = sbr.rel (%p19) target = $region8
    $region5: #{tpu_custom_call.1} parent=1 // loop_body
      %s23 = ssub.s32 %s18, 1
      %s24 = ssub.s32 %s18, 2
      %s31 = sadd.s32 1, %s26
      %p32 = scmp.ge.s32.totalorder %s31, 1
      %s33 = scalar_select %p32, 0, %s31
      %s34 = sadd.s32 1, %s25
      %s35 = scalar_select %p32, %s34, %s25
      %p36 = scmp.ge.s32.totalorder %s35, 4
      %s37 = scalar_select %p36, 0, %s35
      %s38 = ssub.s32 %s25, %s37
      %s39 = ssub.s32 %s26, %s33
      %s40 = sor.u32 %s38, %s39
      %p41 = scmp.eq.s32.totalorder %s40, 0
      %s43 = sadd.s32 %s42, 1
      %s44 = scalar_select %p41, %s42, %s43
      %p47 = pneg %p41
      %p48 = scmp.eq.s32.totalorder %s18, 3
      %p49 = por %p47, %p48
      %p50 = scmp.ne.s32.totalorder %s42, %s45
      %p51 = scmp.eq.s32.totalorder %s18, 0
      %p52 = por %p50, %p51
      %p53 = scmp.ne.s32.totalorder %s42, %s45
      %p54 = scmp.eq.s32.totalorder %s23, 3
      %p55 = por %p53, %p54
      %p56 = scmp.ne.s32.totalorder %s45, %s46
      %p57 = scmp.eq.s32.totalorder %s23, 0
      %p58 = por %p56, %p57
      %p59 = scmp.ne.s32.totalorder %s45, %s46
      %p60 = scmp.eq.s32.totalorder %s24, 3
      %p61 = por %p59, %p60
      %p63 = scmp.ne.s32.totalorder %s46, %s62
      %p64 = scmp.eq.s32.totalorder %s24, 0
      %p65 = por %p63, %p64
      %s66 = ssub.s32 %s25, %s37
      %s67 = ssub.s32 %s26, %s33
      %s68 = sor.u32 %s66, %s67
      %p69 = scmp.eq.s32.totalorder %s68, 0
      %s71 = sadd.s32 %s70, 1
      %s72 = scalar_select %p69, %s70, %s71
      %p75 = pneg %p69
      %p76 = scmp.eq.s32.totalorder %s18, 3
      %p77 = por %p75, %p76
      %p78 = scmp.ne.s32.totalorder %s70, %s73
      %p79 = scmp.eq.s32.totalorder %s18, 0
      %p80 = por %p78, %p79
      %p81 = scmp.ne.s32.totalorder %s70, %s73
      %p82 = scmp.eq.s32.totalorder %s23, 3
      %p83 = por %p81, %p82
      %p84 = scmp.ne.s32.totalorder %s73, %s74
      %p85 = scmp.eq.s32.totalorder %s23, 0
      %p86 = por %p84, %p85
      %p87 = scmp.ne.s32.totalorder %s73, %s74
      %p88 = scmp.eq.s32.totalorder %s24, 3
      %p89 = por %p87, %p88
      %p91 = scmp.ne.s32.totalorder %s74, %s90
      %p92 = scmp.eq.s32.totalorder %s24, 0
      %p93 = por %p91, %p92
      %p94 = scmp.le.s32.totalorder 1, %s18
      %p95 = scmp.lt.s32.totalorder %s18, 5
      %p96 = pnand %p94, %p95
      %p97 = pneg %p96
      // Predicated region
      $region9: #{tpu_custom_call.1} parent=5 // pred_check
        _
      $region10: #{tpu_custom_call.1} parent=5 // pred_check_branch
        %99 = sbr.rel (%p96) target = $region12
      $region11: #{tpu_custom_call.1} parent=5 // pred_region
        %s100 = ssub.s32 %s18, 1
      $region12: #{tpu_custom_call.1} parent=5 // pred_fallthru
        _
      %p101 = scmp.lt.s32.totalorder %s18, 4
      // Predicated region
      $region13: #{tpu_custom_call.1} parent=5 // pred_check
        %p102 = pneg %p101
      $region14: #{tpu_custom_call.1} parent=5 // pred_check_branch
        %104 = sbr.rel (%p102) target = $region16
      $region15: #{tpu_custom_call.1} parent=5 // pred_region
        // Predicated region
        $region17: #{tpu_custom_call.1} parent=15 // pred_check
          %p105 = pneg %p52
        $region18: #{tpu_custom_call.1} parent=15 // pred_check_branch
          %107 = sbr.rel (%p105) target = $region20
        $region19: #{tpu_custom_call.1} parent=15 // pred_region
          %s108 = sand.u32 %s42, 1
          %s109 = scalar_lea.sflag [#allocation5], %s108
          %s110 = sand.u32 %s42, 1
          %s111 = smul.addr %s110, 8
          %s112 = scalar_lea.vmem [#allocation4], %s111
          %s114 = ssub.s32 128, 128
          %115 = vsyncadd %s109, %s114
          %s116 = sadd.s32 %s26, %s25
          %s117 = smul.addr %s116, 128
          %s118 = scalar_lea.hbm %s1, %s117
          %s120 = sshll.u32 %s112, 4
          %s121 = int_to_ptr.vmem [resolvable:$true] %s120
          %123 = dma.hbm_to_vmem [thread:$0]  %s118, 128, %s121, %s109
        $region20: #{tpu_custom_call.1} parent=15 // pred_fallthru
          _
      $region16: #{tpu_custom_call.1} parent=5 // pred_fallthru
        _
      %p124 = scmp.le.s32.totalorder 1, %s18
      %p125 = scmp.lt.s32.totalorder %s18, 5
      %p126 = pnand %p124, %p125
      %p127 = pneg %p126
      // Predicated region
      $region21: #{tpu_custom_call.1} parent=5 // pred_check
        _
      $region22: #{tpu_custom_call.1} parent=5 // pred_check_branch
        %129 = sbr.rel (%p126) target = $region24
      $region23: #{tpu_custom_call.1} parent=5 // pred_region
        %s130 = ssub.s32 %s18, 1
        %s131 = sand.u32 %s45, 1
        %s132 = scalar_lea.sflag [#allocation5], %s131
        %s133 = sand.u32 %s45, 1
        %s134 = smul.addr %s133, 8
        %s135 = scalar_lea.vmem [#allocation4], %s134
        // Predicated region
        $region25: #{tpu_custom_call.1} parent=23 // pred_check
          %p136 = pneg %p58
        $region26: #{tpu_custom_call.1} parent=23 // pred_check_branch
          %138 = sbr.rel (%p136) target = $region28
        $region27: #{tpu_custom_call.1} parent=23 // pred_region
          %139 = dma.done %s132, 128
        $region28: #{tpu_custom_call.1} parent=23 // pred_fallthru
          _
        %s140 = sand.u32 %s45, 1
        %s141 = scalar_lea.sflag [#allocation5], %s140
        %s142 = sand.u32 %s45, 1
        %s143 = smul.addr %s142, 8
        %s144 = scalar_lea.vmem [#allocation4], %s143
        %p145 = pneg %p58
        %p146 = pneg %p55
        %p147 = pneg %p86
        %p148 = pneg %p83
        %s149 = sand.u32 %s73, 1
        %s150 = scalar_lea.sflag [#allocation6], %s149
        %s151 = sand.u32 %s73, 1
        %s152 = smul.addr %s151, 8
        %s153 = scalar_lea.vmem [#allocation7], %s152
        %s154 = smul.u32 %s27, 4
        %s155 = sld [smem:[#allocation3 + %s154]]
        %s156 = sadd.s32 %s154, 1
        %s157 = sld [smem:[#allocation3 + %s156]]
        %s158 = sadd.s32 %s154, 2
        %s159 = sld [smem:[#allocation3 + %s158]]
        %s160 = sadd.s32 %s154, 3
        %s161 = sld [smem:[#allocation3 + %s160]]
        %s162 = sadd.s32 %s154, 16
        %s163 = sld [smem:[#allocation3 + %s162]]
        %s164 = sadd.s32 %s154, 17
        %s165 = sld [smem:[#allocation3 + %s164]]
        %s166 = sadd.s32 %s154, 18
        %s167 = sld [smem:[#allocation3 + %s166]]
        %s168 = sadd.s32 %s154, 19
        %s169 = sld [smem:[#allocation3 + %s168]]
        %s170 = smul.u32 %s27, 16
        %s171 = sadd.s32 %s170, 32
        %s172 = sadd.s32 %s154, 96
        %s173 = sld [smem:[#allocation3 + %s171]]
        %s174 = sadd.s32 %s170, 33
        %s175 = sld [smem:[#allocation3 + %s174]]
        %s176 = sadd.s32 %s170, 34
        %s177 = sld [smem:[#allocation3 + %s176]]
        %s178 = sadd.s32 %s170, 35
        %s179 = sld [smem:[#allocation3 + %s178]]
        %s180 = sadd.s32 %s170, 36
        %s181 = sld [smem:[#allocation3 + %s180]]
        %s182 = sadd.s32 %s170, 37
        %s183 = sld [smem:[#allocation3 + %s182]]
        %s184 = sadd.s32 %s170, 38
        %s185 = sld [smem:[#allocation3 + %s184]]
        %s186 = sadd.s32 %s170, 39
        %s187 = sld [smem:[#allocation3 + %s186]]
        %s188 = sadd.s32 %s170, 40
        %s189 = sld [smem:[#allocation3 + %s188]]
        %s190 = sadd.s32 %s170, 41
        %s191 = sld [smem:[#allocation3 + %s190]]
        %s192 = sadd.s32 %s170, 42
        %s193 = sld [smem:[#allocation3 + %s192]]
        %s194 = sadd.s32 %s170, 43
        %s195 = sld [smem:[#allocation3 + %s194]]
        %s196 = sadd.s32 %s170, 44
        %s197 = sld [smem:[#allocation3 + %s196]]
        %s198 = sadd.s32 %s170, 45
        %s199 = sld [smem:[#allocation3 + %s198]]
        %s200 = sadd.s32 %s170, 46
        %s201 = sld [smem:[#allocation3 + %s200]]
        %s202 = sadd.s32 %s170, 47
        %s203 = sld [smem:[#allocation3 + %s202]]
        %s204 = sld [smem:[#allocation3 + %s172]]
        %s205 = sadd.s32 %s154, 97
        %s206 = sld [smem:[#allocation3 + %s205]]
        %s207 = sadd.s32 %s154, 98
        %s208 = sld [smem:[#allocation3 + %s207]]
        %s209 = sadd.s32 %s154, 99
        %s210 = sld [smem:[#allocation3 + %s209]]
        %s211 = sadd.s32 %s170, 112
        %s212 = sadd.s32 %s154, 176
        %s213 = sld [smem:[#allocation3 + %s211]]
        %s214 = sadd.s32 %s170, 113
        %s215 = sld [smem:[#allocation3 + %s214]]
        %s216 = sadd.s32 %s170, 114
        %s217 = sld [smem:[#allocation3 + %s216]]
        %s218 = sadd.s32 %s170, 115
        %s219 = sld [smem:[#allocation3 + %s218]]
        %s220 = sadd.s32 %s170, 116
        %s221 = sld [smem:[#allocation3 + %s220]]
        %s222 = sadd.s32 %s170, 117
        %s223 = sld [smem:[#allocation3 + %s222]]
        %s224 = sadd.s32 %s170, 118
        %s225 = sld [smem:[#allocation3 + %s224]]
        %s226 = sadd.s32 %s170, 119
        %s227 = sld [smem:[#allocation3 + %s226]]
        %s228 = sadd.s32 %s170, 120
        %s229 = sld [smem:[#allocation3 + %s228]]
        %s230 = sadd.s32 %s170, 121
        %s231 = sld [smem:[#allocation3 + %s230]]
        %s232 = sadd.s32 %s170, 122
        %s233 = sld [smem:[#allocation3 + %s232]]
        %s234 = sadd.s32 %s170, 123
        %s235 = sld [smem:[#allocation3 + %s234]]
        %s236 = sadd.s32 %s170, 124
        %s237 = sld [smem:[#allocation3 + %s236]]
        %s238 = sadd.s32 %s170, 125
        %s239 = sld [smem:[#allocation3 + %s238]]
        %s240 = sadd.s32 %s170, 126
        %s241 = sld [smem:[#allocation3 + %s240]]
        %s242 = sadd.s32 %s170, 127
        %s243 = sld [smem:[#allocation3 + %s242]]
        %s244 = sld [smem:[#allocation3 + %s212]]
        %s245 = sadd.s32 %s154, 177
        %s246 = sld [smem:[#allocation3 + %s245]]
        %s247 = sadd.s32 %s154, 178
        %s248 = sld [smem:[#allocation3 + %s247]]
        %s249 = sadd.s32 %s154, 179
        %s250 = sld [smem:[#allocation3 + %s249]]
        %s251 = sadd.s32 %s170, 192
        %s252 = sadd.s32 %s154, 256
        %s253 = sld [smem:[#allocation3 + %s251]]
        %s254 = sadd.s32 %s170, 193
        %s255 = sld [smem:[#allocation3 + %s254]]
        %s256 = sadd.s32 %s170, 194
        %s257 = sld [smem:[#allocation3 + %s256]]
        %s258 = sadd.s32 %s170, 195
        %s259 = sld [smem:[#allocation3 + %s258]]
        %s260 = sadd.s32 %s170, 196
        %s261 = sld [smem:[#allocation3 + %s260]]
        %s262 = sadd.s32 %s170, 197
        %s263 = sld [smem:[#allocation3 + %s262]]
        %s264 = sadd.s32 %s170, 198
        %s265 = sld [smem:[#allocation3 + %s264]]
        %s266 = sadd.s32 %s170, 199
        %s267 = sld [smem:[#allocation3 + %s266]]
        %s268 = sadd.s32 %s170, 200
        %s269 = sld [smem:[#allocation3 + %s268]]
        %s270 = sadd.s32 %s170, 201
        %s271 = sld [smem:[#allocation3 + %s270]]
        %s272 = sadd.s32 %s170, 202
        %s273 = sld [smem:[#allocation3 + %s272]]
        %s274 = sadd.s32 %s170, 203
        %s275 = sld [smem:[#allocation3 + %s274]]
        %s276 = sadd.s32 %s170, 204
        %s277 = sld [smem:[#allocation3 + %s276]]
        %s278 = sadd.s32 %s170, 205
        %s279 = sld [smem:[#allocation3 + %s278]]
        %s280 = sadd.s32 %s170, 206
        %s281 = sld [smem:[#allocation3 + %s280]]
        %s282 = sadd.s32 %s170, 207
        %s283 = sld [smem:[#allocation3 + %s282]]
        %s284 = sld [smem:[#allocation3 + %s252]]
        %s285 = sadd.s32 %s154, 257
        %s286 = sld [smem:[#allocation3 + %s285]]
        %s287 = sadd.s32 %s154, 258
        %s288 = sld [smem:[#allocation3 + %s287]]
        %s289 = sadd.s32 %s154, 259
        %s290 = sld [smem:[#allocation3 + %s289]]
        %s291 = sadd.s32 %s154, 272
        %s292 = sld [smem:[#allocation3 + %s291]]
        %s293 = sadd.s32 %s154, 273
        %s294 = sld [smem:[#allocation3 + %s293]]
        %s295 = sadd.s32 %s154, 274
        %s296 = sld [smem:[#allocation3 + %s295]]
        %s297 = sadd.s32 %s154, 275
        %s298 = sld [smem:[#allocation3 + %s297]]
        %s299 = sadd.s32 %s27, 288
        %s300 = sld [smem:[#allocation3 + %s299]]
        %v301 = vld [vmem:[%s135] sm:$0xff]
        %v302 = vstv %s155
        %v303 = vmul.f32 %v302, %v301
        %v304 = vstv %s163
        %v305 = vadd.f32 %v303, %v304
        %vm306 = vcmp.gt.f32.partialorder %v305, 0.0
        %v307 = vmul.f32 %v305, 1.442695
        %v308 = vpow.pop %v307
        %v309 = vsub.f32 %v308, 1.0
        %v310 = vsel %vm306, %v305, %v309
        %v311 = vstv %s157
        %v312 = vmul.f32 %v311, %v301
        %v313 = vstv %s165
        %v314 = vadd.f32 %v312, %v313
        %vm315 = vcmp.gt.f32.partialorder %v314, 0.0
        %v316 = vmul.f32 %v314, 1.442695
        %v317 = vpow.pop %v316
        %v318 = vsub.f32 %v317, 1.0
        %v319 = vsel %vm315, %v314, %v318
        %v320 = vstv %s159
        %v321 = vmul.f32 %v320, %v301
        %v322 = vstv %s167
        %v323 = vadd.f32 %v321, %v322
        %vm324 = vcmp.gt.f32.partialorder %v323, 0.0
        %v325 = vmul.f32 %v323, 1.442695
        %v326 = vpow.pop %v325
        %v327 = vsub.f32 %v326, 1.0
        %v328 = vsel %vm324, %v323, %v327
        %v329 = vstv %s161
        %v330 = vmul.f32 %v329, %v301
        %v331 = vstv %s169
        %v332 = vadd.f32 %v330, %v331
        %vm333 = vcmp.gt.f32.partialorder %v332, 0.0
        %v334 = vmul.f32 %v332, 1.442695
        %v335 = vpow.pop %v334
        %v336 = vsub.f32 %v335, 1.0
        %v337 = vsel %vm333, %v332, %v336
        %v338 = vstv %s173
        %v339 = vmul.f32 %v338, %v310
        %v340 = vstv %s175
        %v341 = vmul.f32 %v340, %v319
        %v342 = vadd.f32 %v339, %v341
        %v343 = vstv %s177
        %v344 = vmul.f32 %v343, %v328
        %v345 = vadd.f32 %v342, %v344
        %v346 = vstv %s179
        %v347 = vmul.f32 %v346, %v337
        %v348 = vadd.f32 %v345, %v347
        %v349 = vstv %s204
        %v350 = vadd.f32 %v348, %v349
        %vm351 = vcmp.gt.f32.partialorder %v350, 0.0
        %v352 = vmul.f32 %v350, 1.442695
        %v353 = vpow.pop %v352
        %v354 = vsub.f32 %v353, 1.0
        %v355 = vsel %vm351, %v350, %v354
        %v356 = vstv %s181
        %v357 = vmul.f32 %v356, %v310
        %v358 = vstv %s183
        %v359 = vmul.f32 %v358, %v319
        %v360 = vadd.f32 %v357, %v359
        %v361 = vstv %s185
        %v362 = vmul.f32 %v361, %v328
        %v363 = vadd.f32 %v360, %v362
        %v364 = vstv %s187
        %v365 = vmul.f32 %v364, %v337
        %v366 = vadd.f32 %v363, %v365
        %v367 = vstv %s206
        %v368 = vadd.f32 %v366, %v367
        %vm369 = vcmp.gt.f32.partialorder %v368, 0.0
        %v370 = vmul.f32 %v368, 1.442695
        %v371 = vpow.pop %v370
        %v372 = vsub.f32 %v371, 1.0
        %v373 = vsel %vm369, %v368, %v372
        %v374 = vstv %s189
        %v375 = vmul.f32 %v374, %v310
        %v376 = vstv %s191
        %v377 = vmul.f32 %v376, %v319
        %v378 = vadd.f32 %v375, %v377
        %v379 = vstv %s193
        %v380 = vmul.f32 %v379, %v328
        %v381 = vadd.f32 %v378, %v380
        %v382 = vstv %s195
        %v383 = vmul.f32 %v382, %v337
        %v384 = vadd.f32 %v381, %v383
        %v385 = vstv %s208
        %v386 = vadd.f32 %v384, %v385
        %vm387 = vcmp.gt.f32.partialorder %v386, 0.0
        %v388 = vmul.f32 %v386, 1.442695
        %v389 = vpow.pop %v388
        %v390 = vsub.f32 %v389, 1.0
        %v391 = vsel %vm387, %v386, %v390
        %v392 = vstv %s197
        %v393 = vmul.f32 %v392, %v310
        %v394 = vstv %s199
        %v395 = vmul.f32 %v394, %v319
        %v396 = vadd.f32 %v393, %v395
        %v397 = vstv %s201
        %v398 = vmul.f32 %v397, %v328
        %v399 = vadd.f32 %v396, %v398
        %v400 = vstv %s203
        %v401 = vmul.f32 %v400, %v337
        %v402 = vadd.f32 %v399, %v401
        %v403 = vstv %s210
        %v404 = vadd.f32 %v402, %v403
        %vm405 = vcmp.gt.f32.partialorder %v404, 0.0
        %v406 = vmul.f32 %v404, 1.442695
        %v407 = vpow.pop %v406
        %v408 = vsub.f32 %v407, 1.0
        %v409 = vsel %vm405, %v404, %v408
        %v410 = vstv %s213
        %v411 = vmul.f32 %v410, %v355
        %v412 = vstv %s215
        %v413 = vmul.f32 %v412, %v373
        %v414 = vadd.f32 %v411, %v413
        %v415 = vstv %s217
        %v416 = vmul.f32 %v415, %v391
        %v417 = vadd.f32 %v414, %v416
        %v418 = vstv %s219
        %v419 = vmul.f32 %v418, %v409
        %v420 = vadd.f32 %v417, %v419
        %v421 = vstv %s244
        %v422 = vadd.f32 %v420, %v421
        %vm423 = vcmp.gt.f32.partialorder %v422, 0.0
        %v424 = vmul.f32 %v422, 1.442695
        %v425 = vpow.pop %v424
        %v426 = vsub.f32 %v425, 1.0
        %v427 = vsel %vm423, %v422, %v426
        %v428 = vstv %s221
        %v429 = vmul.f32 %v428, %v355
        %v430 = vstv %s223
        %v431 = vmul.f32 %v430, %v373
        %v432 = vadd.f32 %v429, %v431
        %v433 = vstv %s225
        %v434 = vmul.f32 %v433, %v391
        %v435 = vadd.f32 %v432, %v434
        %v436 = vstv %s227
        %v437 = vmul.f32 %v436, %v409
        %v438 = vadd.f32 %v435, %v437
        %v439 = vstv %s246
        %v440 = vadd.f32 %v438, %v439
        %vm441 = vcmp.gt.f32.partialorder %v440, 0.0
        %v442 = vmul.f32 %v440, 1.442695
        %v443 = vpow.pop %v442
        %v444 = vsub.f32 %v443, 1.0
        %v445 = vsel %vm441, %v440, %v444
        %v446 = vstv %s229
        %v447 = vmul.f32 %v446, %v355
        %v448 = vstv %s231
        %v449 = vmul.f32 %v448, %v373
        %v450 = vadd.f32 %v447, %v449
        %v451 = vstv %s233
        %v452 = vmul.f32 %v451, %v391
        %v453 = vadd.f32 %v450, %v452
        %v454 = vstv %s235
        %v455 = vmul.f32 %v454, %v409
        %v456 = vadd.f32 %v453, %v455
        %v457 = vstv %s248
        %v458 = vadd.f32 %v456, %v457
        %vm459 = vcmp.gt.f32.partialorder %v458, 0.0
        %v460 = vmul.f32 %v458, 1.442695
        %v461 = vpow.pop %v460
        %v462 = vsub.f32 %v461, 1.0
        %v463 = vsel %vm459, %v458, %v462
        %v464 = vstv %s237
        %v465 = vmul.f32 %v464, %v355
        %v466 = vstv %s239
        %v467 = vmul.f32 %v466, %v373
        %v468 = vadd.f32 %v465, %v467
        %v469 = vstv %s241
        %v470 = vmul.f32 %v469, %v391
        %v471 = vadd.f32 %v468, %v470
        %v472 = vstv %s243
        %v473 = vmul.f32 %v472, %v409
        %v474 = vadd.f32 %v471, %v473
        %v475 = vstv %s250
        %v476 = vadd.f32 %v474, %v475
        %vm477 = vcmp.gt.f32.partialorder %v476, 0.0
        %v478 = vmul.f32 %v476, 1.442695
        %v479 = vpow.pop %v478
        %v480 = vsub.f32 %v479, 1.0
        %v481 = vsel %vm477, %v476, %v480
        %v482 = vstv %s253
        %v483 = vmul.f32 %v482, %v427
        %v484 = vstv %s255
        %v485 = vmul.f32 %v484, %v445
        %v486 = vadd.f32 %v483, %v485
        %v487 = vstv %s257
        %v488 = vmul.f32 %v487, %v463
        %v489 = vadd.f32 %v486, %v488
        %v490 = vstv %s259
        %v491 = vmul.f32 %v490, %v481
        %v492 = vadd.f32 %v489, %v491
        %v493 = vstv %s284
        %v494 = vadd.f32 %v492, %v493
        %vm495 = vcmp.gt.f32.partialorder %v494, 0.0
        %v496 = vmul.f32 %v494, 1.442695
        %v497 = vpow.pop %v496
        %v498 = vsub.f32 %v497, 1.0
        %v499 = vsel %vm495, %v494, %v498
        %v500 = vstv %s261
        %v501 = vmul.f32 %v500, %v427
        %v502 = vstv %s263
        %v503 = vmul.f32 %v502, %v445
        %v504 = vadd.f32 %v501, %v503
        %v505 = vstv %s265
        %v506 = vmul.f32 %v505, %v463
        %v507 = vadd.f32 %v504, %v506
        %v508 = vstv %s267
        %v509 = vmul.f32 %v508, %v481
        %v510 = vadd.f32 %v507, %v509
        %v511 = vstv %s286
        %v512 = vadd.f32 %v510, %v511
        %vm513 = vcmp.gt.f32.partialorder %v512, 0.0
        %v514 = vmul.f32 %v512, 1.442695
        %v515 = vpow.pop %v514
        %v516 = vsub.f32 %v515, 1.0
        %v517 = vsel %vm513, %v512, %v516
        %v518 = vstv %s269
        %v519 = vmul.f32 %v518, %v427
        %v520 = vstv %s271
        %v521 = vmul.f32 %v520, %v445
        %v522 = vadd.f32 %v519, %v521
        %v523 = vstv %s273
        %v524 = vmul.f32 %v523, %v463
        %v525 = vadd.f32 %v522, %v524
        %v526 = vstv %s275
        %v527 = vmul.f32 %v526, %v481
        %v528 = vadd.f32 %v525, %v527
        %v529 = vstv %s288
        %v530 = vadd.f32 %v528, %v529
        %vm531 = vcmp.gt.f32.partialorder %v530, 0.0
        %v532 = vmul.f32 %v530, 1.442695
        %v533 = vpow.pop %v532
        %v534 = vsub.f32 %v533, 1.0
        %v535 = vsel %vm531, %v530, %v534
        %v536 = vstv %s277
        %v537 = vmul.f32 %v536, %v427
        %v538 = vstv %s279
        %v539 = vmul.f32 %v538, %v445
        %v540 = vadd.f32 %v537, %v539
        %v541 = vstv %s281
        %v542 = vmul.f32 %v541, %v463
        %v543 = vadd.f32 %v540, %v542
        %v544 = vstv %s283
        %v545 = vmul.f32 %v544, %v481
        %v546 = vadd.f32 %v543, %v545
        %v547 = vstv %s290
        %v548 = vadd.f32 %v546, %v547
        %vm549 = vcmp.gt.f32.partialorder %v548, 0.0
        %v550 = vmul.f32 %v548, 1.442695
        %v551 = vpow.pop %v550
        %v552 = vsub.f32 %v551, 1.0
        %v553 = vsel %vm549, %v548, %v552
        %v554 = vstv %s292
        %v555 = vmul.f32 %v554, %v499
        %v556 = vstv %s294
        %v557 = vmul.f32 %v556, %v517
        %v558 = vadd.f32 %v555, %v557
        %v559 = vstv %s296
        %v560 = vmul.f32 %v559, %v535
        %v561 = vadd.f32 %v558, %v560
        %v562 = vstv %s298
        %v563 = vmul.f32 %v562, %v553
        %v564 = vadd.f32 %v561, %v563
        %v565 = vstv %s300
        %v566 = vadd.f32 %v564, %v565
        %567 = vst [vmem:[%s153] sm:$0xff] %v566
        %s568 = sand.u32 %s73, 1
        %s569 = scalar_lea.sflag [#allocation6], %s568
        %s570 = sand.u32 %s73, 1
        %s571 = smul.addr %s570, 8
        %s572 = scalar_lea.vmem [#allocation7], %s571
        // Predicated region
        $region29: #{tpu_custom_call.1} parent=23 // pred_check
          %p573 = pneg %p83
        $region30: #{tpu_custom_call.1} parent=23 // pred_check_branch
          %575 = sbr.rel (%p573) target = $region32
        $region31: #{tpu_custom_call.1} parent=23 // pred_region
          %s577 = ssub.s32 128, 128
          %578 = vsyncadd %s569, %s577
          %s579 = sadd.s32 %s28, %s27
          %s580 = smul.addr %s579, 128
          %s581 = scalar_lea.hbm %s2, %s580
          %s583 = sshll.u32 %s572, 4
          %s584 = int_to_ptr.vmem [resolvable:$true] %s583
          %586 = dma.vmem_to_hbm [thread:$0]  %s584, 128, %s581, %s569
        $region32: #{tpu_custom_call.1} parent=23 // pred_fallthru
          _
      $region24: #{tpu_custom_call.1} parent=5 // pred_fallthru
        _
      %p587 = scmp.le.s32.totalorder 2, %s18
      // Predicated region
      $region33: #{tpu_custom_call.1} parent=5 // pred_check
        %p588 = pneg %p587
      $region34: #{tpu_custom_call.1} parent=5 // pred_check_branch
        %590 = sbr.rel (%p588) target = $region36
      $region35: #{tpu_custom_call.1} parent=5 // pred_region
        %s591 = ssub.s32 %s18, 2
        // Predicated region
        $region37: #{tpu_custom_call.1} parent=35 // pred_check
          %p592 = pneg %p89
        $region38: #{tpu_custom_call.1} parent=35 // pred_check_branch
          %594 = sbr.rel (%p592) target = $region40
        $region39: #{tpu_custom_call.1} parent=35 // pred_region
          %s595 = sand.u32 %s74, 1
          %s596 = scalar_lea.sflag [#allocation6], %s595
          %s597 = sand.u32 %s74, 1
          %s598 = smul.addr %s597, 8
          %s599 = scalar_lea.vmem [#allocation7], %s598
          %600 = dma.done %s596, 128
        $region40: #{tpu_custom_call.1} parent=35 // pred_fallthru
          _
      $region36: #{tpu_custom_call.1} parent=5 // pred_fallthru
        _
    $region6: #{tpu_custom_call.1} parent=1 // loop_footer
      %s22 = sadd.s32 1, %s18
    $region7: #{tpu_custom_call.1} parent=1 // loop_footer_branch
      %17 = sbr.rel target = $region3
    $region8: #{tpu_custom_call.1} parent=1 // loop_exit
      _
    %601 = vsyncpa [#allocation5], 1
    %s602 = scalar_lea.sflag [#allocation5], 1
    %603 = vsyncpa %s602, 1
    %604 = vsyncpa [#allocation6], 1
    %s605 = scalar_lea.sflag [#allocation6], 1
    %606 = vsyncpa %s605, 1

</llo_original>
